<compile_context>
chip_gen: v5e
topology: v5e:2x2
jax: 0.10.0
libtpu: 0.0.40
codegen_flags: <defaults>
</compile_context>

<pallas_src>
import functools

import jax
import jax.numpy as jnp
import numpy as np
from jax.experimental import pallas as pl
from jax.experimental.pallas import tpu as pltpu


def _amp_loss_kernel(x_ref, y_ref, bwr_ref, bwi_ref, fhr_ref, fhi_ref, fhs_ref,
                     out_ref, *, H, half):
    hp = jax.lax.Precision.HIGHEST

    # (2H, TB*W): x-image rows stacked over y-image rows.  Sublane concat is
    # tile-aligned when H % 8 == 0 -> a couple of vreg copies, no relayout.
    m = jnp.concatenate([x_ref[0], y_ref[0]], axis=0)

    # Stage 1: real rDFT along W (TB-block block-diagonal, zero-padded basis).
    ur = jnp.dot(m, bwr_ref[...], preferred_element_type=jnp.float32, precision=hp)
    ui = jnp.dot(m, bwi_ref[...], preferred_element_type=jnp.float32, precision=hp)

    # Stage 2: complex DFT along H.  The H-basis is a 2-block block-diagonal
    # (x rows and y rows transform independently).  3-multiply complex matmul:
    #   X = (FHr + i*FHi) @ (Ur + i*Ui)
    m1 = jnp.dot(fhr_ref[...], ur, preferred_element_type=jnp.float32, precision=hp)
    m2 = jnp.dot(fhi_ref[...], ui, preferred_element_type=jnp.float32, precision=hp)
    m3 = jnp.dot(fhs_ref[...], ur + ui, preferred_element_type=jnp.float32,
                 precision=hp)
    xr = m1 - m2
    xi = m3 - m1 - m2

    mag = jnp.sqrt(xr * xr + xi * xi)          # (2H, TB*Wfp)

    # | |X| - |Y| | : x rows vs y rows (pad columns are 0 for both operands).
    diff = jnp.abs(mag[:H] - mag[H:])          # (H, TB*Wfp)

    # Lane-dense (8, half) partial sum for this block; final reduce is in XLA.
    if H % 8 == 0:
        partial = diff[0:8]
        for r in range(1, H // 8):             # unrolled static loop of VPU adds
            partial = partial + diff[r * 8:(r + 1) * 8]
    else:
        partial = jnp.concatenate(
            [jnp.sum(diff, axis=0, keepdims=True),
             jnp.zeros((7, half), jnp.float32)], axis=0)
    out_ref[0] = partial


def _build_matrices(H, W, TB, Wfp):
    """Block-diagonal rDFT-along-W basis (columns zero-padded to Wfp) and the
    2-block block-diagonal DFT-along-H bases (real, imag, real+imag)."""
    Wf = W // 2 + 1
    w = np.arange(W)[:, None].astype(np.float64)
    kw = np.arange(Wfp)[None, :].astype(np.float64)
    ang_w = -2.0 * np.pi * (w * kw) / W
    col_mask = (np.arange(Wfp)[None, :] < Wf).astype(np.float64)
    fwr = np.cos(ang_w) * col_mask
    fwi = np.sin(ang_w) * col_mask

    L, Lp = TB * W, TB * Wfp
    bwr = np.zeros((L, Lp), np.float32)
    bwi = np.zeros((L, Lp), np.float32)
    for b in range(TB):
        bwr[b * W:(b + 1) * W, b * Wfp:(b + 1) * Wfp] = fwr
        bwi[b * W:(b + 1) * W, b * Wfp:(b + 1) * Wfp] = fwi

    h = np.arange(H).astype(np.float64)
    ang_h = -2.0 * np.pi * np.outer(h, h) / H
    fh_r = np.cos(ang_h)
    fh_i = np.sin(ang_h)
    fhr = np.zeros((2 * H, 2 * H), np.float32)
    fhi = np.zeros((2 * H, 2 * H), np.float32)
    fhr[:H, :H] = fh_r
    fhr[H:, H:] = fh_r
    fhi[:H, :H] = fh_i
    fhi[H:, H:] = fh_i
    fhs = fhr + fhi
    return tuple(jnp.asarray(a) for a in (bwr, bwi, fhr, fhi, fhs))


@jax.jit
def amp_loss(x, y):
    """x, y: (B, C, H, W) float32 (NCHW). Scalar L1 loss of rfft2 magnitudes."""
    B, C, H, W = x.shape
    BC = B * C
    Wf = W // 2 + 1
    Wfp = W                                   # zero-padded rfft width (lane aligned)

    # Images folded per block: aim for ~128 lanes of W; TB must divide BC.
    tb_cap = max(1, 128 // W)
    TB = 1
    for t in range(min(tb_cap, BC), 0, -1):
        if BC % t == 0:
            TB = t
            break
    NB = BC // TB
    L, Lp = TB * W, TB * Wfp
    half = TB * Wfp

    # Layout plumbing (XLA side): fold TB images into the lane axis.
    def fold(a):
        a = a.reshape(NB, TB, H, W).astype(jnp.float32)
        return a.transpose(0, 2, 1, 3).reshape(NB, H, TB * W)

    xT = fold(x.reshape(BC, H, W))
    yT = fold(y.reshape(BC, H, W))
    bwr, bwi, fhr, fhi, fhs = _build_matrices(H, W, TB, Wfp)

    kernel = functools.partial(_amp_loss_kernel, H=H, half=half)

    partials = pl.pallas_call(
        kernel,
        out_shape=jax.ShapeDtypeStruct((NB, 8, half), jnp.float32),
        grid=(NB,),
        in_specs=[
            pl.BlockSpec((1, H, TB * W), lambda i: (i, 0, 0)),     # x block
            pl.BlockSpec((1, H, TB * W), lambda i: (i, 0, 0)),     # y block
            pl.BlockSpec((L, Lp), lambda i: (0, 0)),               # rDFT real (blk-diag)
            pl.BlockSpec((L, Lp), lambda i: (0, 0)),               # rDFT imag (blk-diag)
            pl.BlockSpec((2 * H, 2 * H), lambda i: (0, 0)),        # F_H real (2-blk)
            pl.BlockSpec((2 * H, 2 * H), lambda i: (0, 0)),        # F_H imag (2-blk)
            pl.BlockSpec((2 * H, 2 * H), lambda i: (0, 0)),        # F_H real+imag
        ],
        out_specs=pl.BlockSpec((1, 8, half), lambda i: (i, 0, 0)),
        compiler_params=pltpu.CompilerParams(
            dimension_semantics=("parallel",)),
    )(xT, yT, bwr, bwi, fhr, fhi, fhs)

    return jnp.sum(partials) / jnp.float32(BC * H * Wf)


def amp_loss_reference(x, y):
    xm = jnp.abs(jnp.fft.rfft2(x, norm="backward"))
    ym = jnp.abs(jnp.fft.rfft2(y, norm="backward"))
    return jnp.mean(jnp.abs(xm - ym))


if __name__ == "__main__":
    key = jax.random.PRNGKey(0)
    kx, ky = jax.random.split(key)
    B, C, H, W = 2, 4, 16, 16
    x = jax.random.normal(kx, (B, C, H, W), dtype=jnp.float32)
    y = jax.random.normal(ky, (B, C, H, W), dtype=jnp.float32)

    loss = jax.block_until_ready(amp_loss(x, y))
    ref = jax.block_until_ready(amp_loss_reference(x, y))
    np.testing.assert_allclose(np.asarray(loss), np.asarray(ref),
                               rtol=2e-3, atol=2e-3)
    print("KERNEL_OK")
</pallas_src>

<mosaic_0001>
module attributes {stable_mosaic.version = 11 : i64} {
  func.func @_amp_loss_kernel(%arg0: i32, %arg1: memref<1x16x128xf32, #tpu.memory_space<vmem>>, %arg2: memref<1x16x128xf32, #tpu.memory_space<vmem>>, %arg3: memref<128x128xf32, #tpu.memory_space<vmem>>, %arg4: memref<128x128xf32, #tpu.memory_space<vmem>>, %arg5: memref<32x32xf32, #tpu.memory_space<vmem>>, %arg6: memref<32x32xf32, #tpu.memory_space<vmem>>, %arg7: memref<32x32xf32, #tpu.memory_space<vmem>>, %arg8: memref<1x8x128xf32, #tpu.memory_space<vmem>>) attributes {dimension_semantics = [#tpu.dimension_semantics<parallel>], iteration_bounds = array<i64: 1>, scalar_prefetch = 0 : i64, scratch_operands = 0 : i64, tpu.core_type = #tpu.core_type<tc>, window_params = [{transform_indices = @transform_0, window_bounds = array<i64: 1, 16, 128>}, {transform_indices = @transform_1, window_bounds = array<i64: 1, 16, 128>}, {pipeline_mode = #tpu.pipeline_mode<synchronous>, transform_indices = @transform_2, window_bounds = array<i64: 128, 128>}, {pipeline_mode = #tpu.pipeline_mode<synchronous>, transform_indices = @transform_3, window_bounds = array<i64: 128, 128>}, {pipeline_mode = #tpu.pipeline_mode<synchronous>, transform_indices = @transform_4, window_bounds = array<i64: 32, 32>}, {pipeline_mode = #tpu.pipeline_mode<synchronous>, transform_indices = @transform_5, window_bounds = array<i64: 32, 32>}, {pipeline_mode = #tpu.pipeline_mode<synchronous>, transform_indices = @transform_6, window_bounds = array<i64: 32, 32>}, {transform_indices = @transform_7, window_bounds = array<i64: 1, 8, 128>}]} {
    %c0 = arith.constant 0 : index
    %c0_0 = arith.constant 0 : index
    %c0_1 = arith.constant 0 : index
    %0 = vector.load %arg1[%c0, %c0_0, %c0_1] : memref<1x16x128xf32, #tpu.memory_space<vmem>>, vector<1x16x128xf32>
    %1 = vector.shape_cast %0 : vector<1x16x128xf32> to vector<16x128xf32>
    %c0_2 = arith.constant 0 : index
    %c0_3 = arith.constant 0 : index
    %c0_4 = arith.constant 0 : index
    %2 = vector.load %arg2[%c0_2, %c0_3, %c0_4] : memref<1x16x128xf32, #tpu.memory_space<vmem>>, vector<1x16x128xf32>
    %3 = vector.shape_cast %2 : vector<1x16x128xf32> to vector<16x128xf32>
    %4 = tpu.concatenate %1, %3 in 0 : vector<16x128xf32>, vector<16x128xf32> -> vector<32x128xf32>
    %c0_5 = arith.constant 0 : index
    %c0_6 = arith.constant 0 : index
    %5 = vector.load %arg3[%c0_5, %c0_6] : memref<128x128xf32, #tpu.memory_space<vmem>>, vector<128x128xf32>
    %cst = arith.constant dense<0.000000e+00> : vector<32x128xf32>
    %6 = tpu.matmul %4, %5, %cst {dimension_numbers = #tpu.dot_dimension_numbers<[1], [0], [0], [1], [0, 0, 1, 1], [], []>, precision = #tpu.contract_precision<fp32>} : vector<32x128xf32>, vector<128x128xf32>, vector<32x128xf32> -> vector<32x128xf32>
    %c0_7 = arith.constant 0 : index
    %c0_8 = arith.constant 0 : index
    %7 = vector.load %arg4[%c0_7, %c0_8] : memref<128x128xf32, #tpu.memory_space<vmem>>, vector<128x128xf32>
    %cst_9 = arith.constant dense<0.000000e+00> : vector<32x128xf32>
    %8 = tpu.matmul %4, %7, %cst_9 {dimension_numbers = #tpu.dot_dimension_numbers<[1], [0], [0], [1], [0, 0, 1, 1], [], []>, precision = #tpu.contract_precision<fp32>} : vector<32x128xf32>, vector<128x128xf32>, vector<32x128xf32> -> vector<32x128xf32>
    %c0_10 = arith.constant 0 : index
    %c0_11 = arith.constant 0 : index
    %9 = vector.load %arg5[%c0_10, %c0_11] : memref<32x32xf32, #tpu.memory_space<vmem>>, vector<32x32xf32>
    %cst_12 = arith.constant dense<0.000000e+00> : vector<32x128xf32>
    %10 = tpu.matmul %9, %6, %cst_12 {dimension_numbers = #tpu.dot_dimension_numbers<[1], [0], [0], [1], [0, 0, 1, 1], [], []>, precision = #tpu.contract_precision<fp32>} : vector<32x32xf32>, vector<32x128xf32>, vector<32x128xf32> -> vector<32x128xf32>
    %c0_13 = arith.constant 0 : index
    %c0_14 = arith.constant 0 : index
    %11 = vector.load %arg6[%c0_13, %c0_14] : memref<32x32xf32, #tpu.memory_space<vmem>>, vector<32x32xf32>
    %cst_15 = arith.constant dense<0.000000e+00> : vector<32x128xf32>
    %12 = tpu.matmul %11, %8, %cst_15 {dimension_numbers = #tpu.dot_dimension_numbers<[1], [0], [0], [1], [0, 0, 1, 1], [], []>, precision = #tpu.contract_precision<fp32>} : vector<32x32xf32>, vector<32x128xf32>, vector<32x128xf32> -> vector<32x128xf32>
    %c0_16 = arith.constant 0 : index
    %c0_17 = arith.constant 0 : index
    %13 = vector.load %arg7[%c0_16, %c0_17] : memref<32x32xf32, #tpu.memory_space<vmem>>, vector<32x32xf32>
    %14 = arith.addf %6, %8 : vector<32x128xf32>
    %cst_18 = arith.constant dense<0.000000e+00> : vector<32x128xf32>
    %15 = tpu.matmul %13, %14, %cst_18 {dimension_numbers = #tpu.dot_dimension_numbers<[1], [0], [0], [1], [0, 0, 1, 1], [], []>, precision = #tpu.contract_precision<fp32>} : vector<32x32xf32>, vector<32x128xf32>, vector<32x128xf32> -> vector<32x128xf32>
    %16 = arith.subf %10, %12 : vector<32x128xf32>
    %17 = arith.subf %15, %10 : vector<32x128xf32>
    %18 = arith.subf %17, %12 : vector<32x128xf32>
    %19 = arith.mulf %16, %16 : vector<32x128xf32>
    %20 = arith.mulf %18, %18 : vector<32x128xf32>
    %21 = arith.addf %19, %20 : vector<32x128xf32>
    %22 = math.sqrt %21 : vector<32x128xf32>
    %23 = vector.extract_strided_slice %22 {offsets = [0, 0], sizes = [16, 128], strides = [1, 1]} : vector<32x128xf32> to vector<16x128xf32>
    %24 = vector.extract_strided_slice %22 {offsets = [16, 0], sizes = [16, 128], strides = [1, 1]} : vector<32x128xf32> to vector<16x128xf32>
    %25 = arith.subf %23, %24 : vector<16x128xf32>
    %26 = math.absf %25 : vector<16x128xf32>
    %27 = vector.extract_strided_slice %26 {offsets = [0, 0], sizes = [8, 128], strides = [1, 1]} : vector<16x128xf32> to vector<8x128xf32>
    %28 = vector.extract_strided_slice %26 {offsets = [8, 0], sizes = [8, 128], strides = [1, 1]} : vector<16x128xf32> to vector<8x128xf32>
    %29 = arith.addf %27, %28 : vector<8x128xf32>
    %c0_19 = arith.constant 0 : index
    %c0_20 = arith.constant 0 : index
    %c0_21 = arith.constant 0 : index
    %30 = vector.load %arg8[%c0_19, %c0_20, %c0_21] : memref<1x8x128xf32, #tpu.memory_space<vmem>>, vector<1x8x128xf32>
    %31 = vector.shape_cast %30 : vector<1x8x128xf32> to vector<8x128xf32>
    %32 = vector.shape_cast %29 : vector<8x128xf32> to vector<1x8x128xf32>
    tpu.vector_store %arg8[%c0_19, %c0_20, %c0_21], %32 {strides = array<i32>} : memref<1x8x128xf32, #tpu.memory_space<vmem>>, vector<1x8x128xf32>,
    return
  }
  func.func @transform_0(%arg0: i32) -> (i32, i32, i32) {
    %c0_i32 = arith.constant 0 : i32
    %c0_i32_0 = arith.constant 0 : i32
    %c0_i32_1 = arith.constant 0 : i32
    return %arg0, %c0_i32, %c0_i32_0 : i32, i32, i32
  }
  func.func @transform_1(%arg0: i32) -> (i32, i32, i32) {
    %c0_i32 = arith.constant 0 : i32
    %c0_i32_0 = arith.constant 0 : i32
    %c0_i32_1 = arith.constant 0 : i32
    return %arg0, %c0_i32, %c0_i32_0 : i32, i32, i32
  }
  func.func @transform_2(%arg0: i32) -> (i32, i32) {
    %c0_i32 = arith.constant 0 : i32
    %c0_i32_0 = arith.constant 0 : i32
    %c0_i32_1 = arith.constant 0 : i32
    return %c0_i32, %c0_i32_0 : i32, i32
  }
  func.func @transform_3(%arg0: i32) -> (i32, i32) {
    %c0_i32 = arith.constant 0 : i32
    %c0_i32_0 = arith.constant 0 : i32
    %c0_i32_1 = arith.constant 0 : i32
    return %c0_i32, %c0_i32_0 : i32, i32
  }
  func.func @transform_4(%arg0: i32) -> (i32, i32) {
    %c0_i32 = arith.constant 0 : i32
    %c0_i32_0 = arith.constant 0 : i32
    %c0_i32_1 = arith.constant 0 : i32
    return %c0_i32, %c0_i32_0 : i32, i32
  }
  func.func @transform_5(%arg0: i32) -> (i32, i32) {
    %c0_i32 = arith.constant 0 : i32
    %c0_i32_0 = arith.constant 0 : i32
    %c0_i32_1 = arith.constant 0 : i32
    return %c0_i32, %c0_i32_0 : i32, i32
  }
  func.func @transform_6(%arg0: i32) -> (i32, i32) {
    %c0_i32 = arith.constant 0 : i32
    %c0_i32_0 = arith.constant 0 : i32
    %c0_i32_1 = arith.constant 0 : i32
    return %c0_i32, %c0_i32_0 : i32, i32
  }
  func.func @transform_7(%arg0: i32) -> (i32, i32, i32) {
    %c0_i32 = arith.constant 0 : i32
    %c0_i32_0 = arith.constant 0 : i32
    %c0_i32_1 = arith.constant 0 : i32
    return %arg0, %c0_i32, %c0_i32_0 : i32, i32, i32
  }
}

</mosaic_0001>

<llo_original>
// kernel: amp_loss.1
$region0: #{amp_loss.1}
  #allocation0 [shape = 'u32[]', space=smem, size = 0x4, offset = 0x4, fixed_abs, tag = 'smem constant byte address 0x4 - core index']
  #allocation1 [shape = 'u32[72,128]{1,0:T(1,128)}', space=vmem, size = 0x9000, scoped, tag = 'internal scratch']
  %s0 = inlined_call_operand.vmem [shape: f32[1,16,128], index: 0, kind: input, shape index: {}]
  %s1 = inlined_call_operand.vmem [shape: f32[1,16,128], index: 1, kind: input, shape index: {}]
  %s2 = inlined_call_operand.vmem [shape: f32[128,128], index: 2, kind: input, shape index: {}]
  %s3 = inlined_call_operand.vmem [shape: f32[128,128], index: 3, kind: input, shape index: {}]
  %s4 = inlined_call_operand.vmem [shape: f32[32,32], index: 4, kind: input, shape index: {}]
  %s5 = inlined_call_operand.vmem [shape: f32[32,32], index: 5, kind: input, shape index: {}]
  %s6 = inlined_call_operand.vmem [shape: f32[32,32], index: 6, kind: input, shape index: {}]
  %s7 = inlined_call_operand.vmem [shape: f32[1,8,128], index: 7, kind: output, shape index: {}]
  %s8 = sld [smem:[#allocation0]]
  $region38: #{amp_loss.1} parent=0
    _
  %s10 = ssub.s32 1, %s8
  %s11 = scalar_select 0, %s10, %s8
  // Predicated region
  $region2: #{amp_loss.1} parent=0 // pred_check
    _
  $region3: #{amp_loss.1} parent=0 // pred_check_branch
    %13 = sbr.rel (0) target = $region5
  $region4: #{amp_loss.1} parent=0 // pred_region
    _
  $region5: #{amp_loss.1} parent=0 // pred_fallthru
    _
  // Predicated region
  $region6: #{amp_loss.1} parent=0 // pred_check
    _
  $region7: #{amp_loss.1} parent=0 // pred_check_branch
    %15 = sbr.rel (0) target = $region9
  $region8: #{amp_loss.1} parent=0 // pred_region
    _
  $region9: #{amp_loss.1} parent=0 // pred_fallthru
    _
  // Predicated region
  $region10: #{amp_loss.1} parent=0 // pred_check
    _
  $region11: #{amp_loss.1} parent=0 // pred_check_branch
    %17 = sbr.rel (0) target = $region13
  $region12: #{amp_loss.1} parent=0 // pred_region
    _
  $region13: #{amp_loss.1} parent=0 // pred_fallthru
    _
  // Predicated region
  $region14: #{amp_loss.1} parent=0 // pred_check
    _
  $region15: #{amp_loss.1} parent=0 // pred_check_branch
    %19 = sbr.rel (0) target = $region17
  $region16: #{amp_loss.1} parent=0 // pred_region
    _
  $region17: #{amp_loss.1} parent=0 // pred_fallthru
    _
  // Predicated region
  $region18: #{amp_loss.1} parent=0 // pred_check
    _
  $region19: #{amp_loss.1} parent=0 // pred_check_branch
    %21 = sbr.rel (0) target = $region21
  $region20: #{amp_loss.1} parent=0 // pred_region
    _
  $region21: #{amp_loss.1} parent=0 // pred_fallthru
    _
  // Predicated region
  $region22: #{amp_loss.1} parent=0 // pred_check
    _
  $region23: #{amp_loss.1} parent=0 // pred_check_branch
    %23 = sbr.rel (0) target = $region25
  $region24: #{amp_loss.1} parent=0 // pred_region
    _
  $region25: #{amp_loss.1} parent=0 // pred_fallthru
    _
  // Predicated region
  $region26: #{amp_loss.1} parent=0 // pred_check
    _
  $region27: #{amp_loss.1} parent=0 // pred_check_branch
    %25 = sbr.rel (0) target = $region29
  $region28: #{amp_loss.1} parent=0 // pred_region
    _
  $region29: #{amp_loss.1} parent=0 // pred_fallthru
    _
  %v26 = vld [vmem:[%s0] sm:$0xff]
  %v27 = vld [vmem:[%s0 + $0x8] sm:$0xff]
  %v28 = vld [vmem:[%s1] sm:$0xff]
  %v29 = vld [vmem:[%s1 + $0x8] sm:$0xff]
  %v30 = vld [vmem:[%s2] sm:$0xff]
  %v31 = vld [vmem:[%s2 + $0x8] sm:$0xff]
  %v32 = vld [vmem:[%s2 + $0x10] sm:$0xff]
  %v33 = vld [vmem:[%s2 + $0x18] sm:$0xff]
  %v34 = vld [vmem:[%s2 + $0x20] sm:$0xff]
  %v35 = vld [vmem:[%s2 + $0x28] sm:$0xff]
  %v36 = vld [vmem:[%s2 + $0x30] sm:$0xff]
  %v37 = vld [vmem:[%s2 + $0x38] sm:$0xff]
  %v38 = vld [vmem:[%s2 + $0x40] sm:$0xff]
  %v39 = vld [vmem:[%s2 + $0x48] sm:$0xff]
  %v40 = vld [vmem:[%s2 + $0x50] sm:$0xff]
  %v41 = vld [vmem:[%s2 + $0x58] sm:$0xff]
  %v42 = vld [vmem:[%s2 + $0x60] sm:$0xff]
  %v43 = vld [vmem:[%s2 + $0x68] sm:$0xff]
  %v44 = vld [vmem:[%s2 + $0x70] sm:$0xff]
  %v45 = vld [vmem:[%s2 + $0x78] sm:$0xff]
  %v46 = vand.u32 %v45, 4294901760
  %47 = vmatpush.msra.mxu0 %v46
  %v48 = vand.u32 %v44, 4294901760
  %49 = vmatpush.msra.mxu0 %v48
  %v50 = vand.u32 %v43, 4294901760
  %51 = vmatpush.msra.mxu0 %v50
  %v52 = vand.u32 %v42, 4294901760
  %53 = vmatpush.msra.mxu0 %v52
  %v54 = vand.u32 %v41, 4294901760
  %55 = vmatpush.msra.mxu0 %v54
  %v56 = vand.u32 %v40, 4294901760
  %57 = vmatpush.msra.mxu0 %v56
  %v58 = vand.u32 %v39, 4294901760
  %59 = vmatpush.msra.mxu0 %v58
  %v60 = vand.u32 %v38, 4294901760
  %61 = vmatpush.msra.mxu0 %v60
  %v62 = vand.u32 %v37, 4294901760
  %63 = vmatpush.msra.mxu0 %v62
  %v64 = vand.u32 %v36, 4294901760
  %65 = vmatpush.msra.mxu0 %v64
  %v66 = vand.u32 %v35, 4294901760
  %67 = vmatpush.msra.mxu0 %v66
  %v68 = vand.u32 %v34, 4294901760
  %69 = vmatpush.msra.mxu0 %v68
  %v70 = vand.u32 %v33, 4294901760
  %71 = vmatpush.msra.mxu0 %v70
  %v72 = vand.u32 %v32, 4294901760
  %73 = vmatpush.msra.mxu0 %v72
  %v74 = vand.u32 %v31, 4294901760
  %75 = vmatpush.msra.mxu0 %v74
  %v76 = vand.u32 %v30, 4294901760
  %77 = vmatpush.msra.mxu0 %v76
  %v78 = vand.u32 %v26, 4294901760
  %v79 = vsub.f32 %v26, %v78
  %v80 = vand.u32 %v79, 4294901760
  %v81 = vsub.f32 %v79, %v80
  %v82 = vand.u32 %v81, 4294901760
  %83 = vmatmul.f32.gmra.mxu0 %v82
  %v84 = vpop.f32.mrf.mxu0
  %v85 = vadd.f32 0.0, %v84
  %v86 = vand.u32 %v27, 4294901760
  %v87 = vsub.f32 %v27, %v86
  %v88 = vand.u32 %v87, 4294901760
  %v89 = vsub.f32 %v87, %v88
  %v90 = vand.u32 %v89, 4294901760
  %91 = vmatmul.f32.gmra.mxu0 %v90
  %v92 = vpop.f32.mrf.mxu0
  %v93 = vadd.f32 0.0, %v92
  %v94 = vand.u32 %v28, 4294901760
  %v95 = vsub.f32 %v28, %v94
  %v96 = vand.u32 %v95, 4294901760
  %v97 = vsub.f32 %v95, %v96
  %v98 = vand.u32 %v97, 4294901760
  %99 = vmatmul.f32.gmra.mxu0 %v98
  %v100 = vpop.f32.mrf.mxu0
  %v101 = vadd.f32 0.0, %v100
  %v102 = vand.u32 %v29, 4294901760
  %v103 = vsub.f32 %v29, %v102
  %v104 = vand.u32 %v103, 4294901760
  %v105 = vsub.f32 %v103, %v104
  %v106 = vand.u32 %v105, 4294901760
  %107 = vmatmul.f32.gmra.mxu0 %v106
  %v108 = vpop.f32.mrf.mxu0
  %v109 = vadd.f32 0.0, %v108
  %110 = vdwg.mxu0
  %v111 = vand.u32 %v45, 4294901760
  %v112 = vsub.f32 %v45, %v111
  %v113 = vand.u32 %v112, 4294901760
  %v114 = vsub.f32 %v112, %v113
  %v115 = vand.u32 %v114, 4294901760
  %116 = vmatpush.msra.mxu0 %v115
  %v117 = vand.u32 %v44, 4294901760
  %v118 = vsub.f32 %v44, %v117
  %v119 = vand.u32 %v118, 4294901760
  %v120 = vsub.f32 %v118, %v119
  %v121 = vand.u32 %v120, 4294901760
  %122 = vmatpush.msra.mxu0 %v121
  %v123 = vand.u32 %v43, 4294901760
  %v124 = vsub.f32 %v43, %v123
  %v125 = vand.u32 %v124, 4294901760
  %v126 = vsub.f32 %v124, %v125
  %v127 = vand.u32 %v126, 4294901760
  %128 = vmatpush.msra.mxu0 %v127
  %v129 = vand.u32 %v42, 4294901760
  %v130 = vsub.f32 %v42, %v129
  %v131 = vand.u32 %v130, 4294901760
  %v132 = vsub.f32 %v130, %v131
  %v133 = vand.u32 %v132, 4294901760
  %134 = vmatpush.msra.mxu0 %v133
  %v135 = vand.u32 %v41, 4294901760
  %v136 = vsub.f32 %v41, %v135
  %v137 = vand.u32 %v136, 4294901760
  %v138 = vsub.f32 %v136, %v137
  %v139 = vand.u32 %v138, 4294901760
  %140 = vmatpush.msra.mxu0 %v139
  %v141 = vand.u32 %v40, 4294901760
  %v142 = vsub.f32 %v40, %v141
  %v143 = vand.u32 %v142, 4294901760
  %v144 = vsub.f32 %v142, %v143
  %v145 = vand.u32 %v144, 4294901760
  %146 = vmatpush.msra.mxu0 %v145
  %v147 = vand.u32 %v39, 4294901760
  %v148 = vsub.f32 %v39, %v147
  %v149 = vand.u32 %v148, 4294901760
  %v150 = vsub.f32 %v148, %v149
  %v151 = vand.u32 %v150, 4294901760
  %152 = vmatpush.msra.mxu0 %v151
  %v153 = vand.u32 %v38, 4294901760
  %v154 = vsub.f32 %v38, %v153
  %v155 = vand.u32 %v154, 4294901760
  %v156 = vsub.f32 %v154, %v155
  %v157 = vand.u32 %v156, 4294901760
  %158 = vmatpush.msra.mxu0 %v157
  %v159 = vand.u32 %v37, 4294901760
  %v160 = vsub.f32 %v37, %v159
  %v161 = vand.u32 %v160, 4294901760
  %v162 = vsub.f32 %v160, %v161
  %v163 = vand.u32 %v162, 4294901760
  %164 = vmatpush.msra.mxu0 %v163
  %v165 = vand.u32 %v36, 4294901760
  %v166 = vsub.f32 %v36, %v165
  %v167 = vand.u32 %v166, 4294901760
  %v168 = vsub.f32 %v166, %v167
  %v169 = vand.u32 %v168, 4294901760
  %170 = vmatpush.msra.mxu0 %v169
  %v171 = vand.u32 %v35, 4294901760
  %v172 = vsub.f32 %v35, %v171
  %v173 = vand.u32 %v172, 4294901760
  %v174 = vsub.f32 %v172, %v173
  %v175 = vand.u32 %v174, 4294901760
  %176 = vmatpush.msra.mxu0 %v175
  %v177 = vand.u32 %v34, 4294901760
  %v178 = vsub.f32 %v34, %v177
  %v179 = vand.u32 %v178, 4294901760
  %v180 = vsub.f32 %v178, %v179
  %v181 = vand.u32 %v180, 4294901760
  %182 = vmatpush.msra.mxu0 %v181
  %v183 = vand.u32 %v33, 4294901760
  %v184 = vsub.f32 %v33, %v183
  %v185 = vand.u32 %v184, 4294901760
  %v186 = vsub.f32 %v184, %v185
  %v187 = vand.u32 %v186, 4294901760
  %188 = vmatpush.msra.mxu0 %v187
  %v189 = vand.u32 %v32, 4294901760
  %v190 = vsub.f32 %v32, %v189
  %v191 = vand.u32 %v190, 4294901760
  %v192 = vsub.f32 %v190, %v191
  %v193 = vand.u32 %v192, 4294901760
  %194 = vmatpush.msra.mxu0 %v193
  %v195 = vand.u32 %v31, 4294901760
  %v196 = vsub.f32 %v31, %v195
  %v197 = vand.u32 %v196, 4294901760
  %v198 = vsub.f32 %v196, %v197
  %v199 = vand.u32 %v198, 4294901760
  %200 = vmatpush.msra.mxu0 %v199
  %v201 = vand.u32 %v30, 4294901760
  %v202 = vsub.f32 %v30, %v201
  %v203 = vand.u32 %v202, 4294901760
  %v204 = vsub.f32 %v202, %v203
  %v205 = vand.u32 %v204, 4294901760
  %206 = vmatpush.msra.mxu0 %v205
  %v207 = vand.u32 %v26, 4294901760
  %208 = vmatmul.f32.gmra.mxu0 %v207
  %v209 = vpop.f32.mrf.mxu0
  %v210 = vadd.f32 %v85, %v209
  %v211 = vand.u32 %v27, 4294901760
  %212 = vmatmul.f32.gmra.mxu0 %v211
  %v213 = vpop.f32.mrf.mxu0
  %v214 = vadd.f32 %v93, %v213
  %v215 = vand.u32 %v28, 4294901760
  %216 = vmatmul.f32.gmra.mxu0 %v215
  %v217 = vpop.f32.mrf.mxu0
  %v218 = vadd.f32 %v101, %v217
  %v219 = vand.u32 %v29, 4294901760
  %220 = vmatmul.f32.gmra.mxu0 %v219
  %v221 = vpop.f32.mrf.mxu0
  %v222 = vadd.f32 %v109, %v221
  %223 = vdwg.mxu0
  %v224 = vand.u32 %v45, 4294901760
  %v225 = vsub.f32 %v45, %v224
  %226 = vmatpush.msra.mxu0 %v225
  %v227 = vand.u32 %v44, 4294901760
  %v228 = vsub.f32 %v44, %v227
  %229 = vmatpush.msra.mxu0 %v228
  %v230 = vand.u32 %v43, 4294901760
  %v231 = vsub.f32 %v43, %v230
  %232 = vmatpush.msra.mxu0 %v231
  %v233 = vand.u32 %v42, 4294901760
  %v234 = vsub.f32 %v42, %v233
  %235 = vmatpush.msra.mxu0 %v234
  %v236 = vand.u32 %v41, 4294901760
  %v237 = vsub.f32 %v41, %v236
  %238 = vmatpush.msra.mxu0 %v237
  %v239 = vand.u32 %v40, 4294901760
  %v240 = vsub.f32 %v40, %v239
  %241 = vmatpush.msra.mxu0 %v240
  %v242 = vand.u32 %v39, 4294901760
  %v243 = vsub.f32 %v39, %v242
  %244 = vmatpush.msra.mxu0 %v243
  %v245 = vand.u32 %v38, 4294901760
  %v246 = vsub.f32 %v38, %v245
  %247 = vmatpush.msra.mxu0 %v246
  %v248 = vand.u32 %v37, 4294901760
  %v249 = vsub.f32 %v37, %v248
  %250 = vmatpush.msra.mxu0 %v249
  %v251 = vand.u32 %v36, 4294901760
  %v252 = vsub.f32 %v36, %v251
  %253 = vmatpush.msra.mxu0 %v252
  %v254 = vand.u32 %v35, 4294901760
  %v255 = vsub.f32 %v35, %v254
  %256 = vmatpush.msra.mxu0 %v255
  %v257 = vand.u32 %v34, 4294901760
  %v258 = vsub.f32 %v34, %v257
  %259 = vmatpush.msra.mxu0 %v258
  %v260 = vand.u32 %v33, 4294901760
  %v261 = vsub.f32 %v33, %v260
  %262 = vmatpush.msra.mxu0 %v261
  %v263 = vand.u32 %v32, 4294901760
  %v264 = vsub.f32 %v32, %v263
  %265 = vmatpush.msra.mxu0 %v264
  %v266 = vand.u32 %v31, 4294901760
  %v267 = vsub.f32 %v31, %v266
  %268 = vmatpush.msra.mxu0 %v267
  %v269 = vand.u32 %v30, 4294901760
  %v270 = vsub.f32 %v30, %v269
  %271 = vmatpush.msra.mxu0 %v270
  %v272 = vand.u32 %v26, 4294901760
  %v273 = vsub.f32 %v26, %v272
  %274 = vmatmul.f32.gmra.mxu0 %v273
  %v275 = vpop.f32.mrf.mxu0
  %v276 = vadd.f32 %v210, %v275
  %v277 = vand.u32 %v27, 4294901760
  %v278 = vsub.f32 %v27, %v277
  %279 = vmatmul.f32.gmra.mxu0 %v278
  %v280 = vpop.f32.mrf.mxu0
  %v281 = vadd.f32 %v214, %v280
  %v282 = vand.u32 %v28, 4294901760
  %v283 = vsub.f32 %v28, %v282
  %284 = vmatmul.f32.gmra.mxu0 %v283
  %v285 = vpop.f32.mrf.mxu0
  %v286 = vadd.f32 %v218, %v285
  %v287 = vand.u32 %v29, 4294901760
  %v288 = vsub.f32 %v29, %v287
  %289 = vmatmul.f32.gmra.mxu0 %v288
  %v290 = vpop.f32.mrf.mxu0
  %v291 = vadd.f32 %v222, %v290
  %292 = vdwg.mxu0
  %v293 = vand.u32 %v45, 4294901760
  %294 = vmatpush.msra.mxu0 %v293
  %v295 = vand.u32 %v44, 4294901760
  %296 = vmatpush.msra.mxu0 %v295
  %v297 = vand.u32 %v43, 4294901760
  %298 = vmatpush.msra.mxu0 %v297
  %v299 = vand.u32 %v42, 4294901760
  %300 = vmatpush.msra.mxu0 %v299
  %v301 = vand.u32 %v41, 4294901760
  %302 = vmatpush.msra.mxu0 %v301
  %v303 = vand.u32 %v40, 4294901760
  %304 = vmatpush.msra.mxu0 %v303
  %v305 = vand.u32 %v39, 4294901760
  %306 = vmatpush.msra.mxu0 %v305
  %v307 = vand.u32 %v38, 4294901760
  %308 = vmatpush.msra.mxu0 %v307
  %v309 = vand.u32 %v37, 4294901760
  %310 = vmatpush.msra.mxu0 %v309
  %v311 = vand.u32 %v36, 4294901760
  %312 = vmatpush.msra.mxu0 %v311
  %v313 = vand.u32 %v35, 4294901760
  %314 = vmatpush.msra.mxu0 %v313
  %v315 = vand.u32 %v34, 4294901760
  %316 = vmatpush.msra.mxu0 %v315
  %v317 = vand.u32 %v33, 4294901760
  %318 = vmatpush.msra.mxu0 %v317
  %v319 = vand.u32 %v32, 4294901760
  %320 = vmatpush.msra.mxu0 %v319
  %v321 = vand.u32 %v31, 4294901760
  %322 = vmatpush.msra.mxu0 %v321
  %v323 = vand.u32 %v30, 4294901760
  %324 = vmatpush.msra.mxu0 %v323
  %v325 = vand.u32 %v26, 4294901760
  %v326 = vsub.f32 %v26, %v325
  %v327 = vand.u32 %v326, 4294901760
  %328 = vmatmul.f32.gmra.mxu0 %v327
  %v329 = vpop.f32.mrf.mxu0
  %v330 = vadd.f32 %v276, %v329
  %v331 = vand.u32 %v27, 4294901760
  %v332 = vsub.f32 %v27, %v331
  %v333 = vand.u32 %v332, 4294901760
  %334 = vmatmul.f32.gmra.mxu0 %v333
  %v335 = vpop.f32.mrf.mxu0
  %v336 = vadd.f32 %v281, %v335
  %v337 = vand.u32 %v28, 4294901760
  %v338 = vsub.f32 %v28, %v337
  %v339 = vand.u32 %v338, 4294901760
  %340 = vmatmul.f32.gmra.mxu0 %v339
  %v341 = vpop.f32.mrf.mxu0
  %v342 = vadd.f32 %v286, %v341
  %v343 = vand.u32 %v29, 4294901760
  %v344 = vsub.f32 %v29, %v343
  %v345 = vand.u32 %v344, 4294901760
  %346 = vmatmul.f32.gmra.mxu0 %v345
  %v347 = vpop.f32.mrf.mxu0
  %v348 = vadd.f32 %v291, %v347
  %349 = vdwg.mxu0
  %v350 = vand.u32 %v45, 4294901760
  %v351 = vsub.f32 %v45, %v350
  %v352 = vand.u32 %v351, 4294901760
  %353 = vmatpush.msra.mxu0 %v352
  %v354 = vand.u32 %v44, 4294901760
  %v355 = vsub.f32 %v44, %v354
  %v356 = vand.u32 %v355, 4294901760
  %357 = vmatpush.msra.mxu0 %v356
  %v358 = vand.u32 %v43, 4294901760
  %v359 = vsub.f32 %v43, %v358
  %v360 = vand.u32 %v359, 4294901760
  %361 = vmatpush.msra.mxu0 %v360
  %v362 = vand.u32 %v42, 4294901760
  %v363 = vsub.f32 %v42, %v362
  %v364 = vand.u32 %v363, 4294901760
  %365 = vmatpush.msra.mxu0 %v364
  %v366 = vand.u32 %v41, 4294901760
  %v367 = vsub.f32 %v41, %v366
  %v368 = vand.u32 %v367, 4294901760
  %369 = vmatpush.msra.mxu0 %v368
  %v370 = vand.u32 %v40, 4294901760
  %v371 = vsub.f32 %v40, %v370
  %v372 = vand.u32 %v371, 4294901760
  %373 = vmatpush.msra.mxu0 %v372
  %v374 = vand.u32 %v39, 4294901760
  %v375 = vsub.f32 %v39, %v374
  %v376 = vand.u32 %v375, 4294901760
  %377 = vmatpush.msra.mxu0 %v376
  %v378 = vand.u32 %v38, 4294901760
  %v379 = vsub.f32 %v38, %v378
  %v380 = vand.u32 %v379, 4294901760
  %381 = vmatpush.msra.mxu0 %v380
  %v382 = vand.u32 %v37, 4294901760
  %v383 = vsub.f32 %v37, %v382
  %v384 = vand.u32 %v383, 4294901760
  %385 = vmatpush.msra.mxu0 %v384
  %v386 = vand.u32 %v36, 4294901760
  %v387 = vsub.f32 %v36, %v386
  %v388 = vand.u32 %v387, 4294901760
  %389 = vmatpush.msra.mxu0 %v388
  %v390 = vand.u32 %v35, 4294901760
  %v391 = vsub.f32 %v35, %v390
  %v392 = vand.u32 %v391, 4294901760
  %393 = vmatpush.msra.mxu0 %v392
  %v394 = vand.u32 %v34, 4294901760
  %v395 = vsub.f32 %v34, %v394
  %v396 = vand.u32 %v395, 4294901760
  %397 = vmatpush.msra.mxu0 %v396
  %v398 = vand.u32 %v33, 4294901760
  %v399 = vsub.f32 %v33, %v398
  %v400 = vand.u32 %v399, 4294901760
  %401 = vmatpush.msra.mxu0 %v400
  %v402 = vand.u32 %v32, 4294901760
  %v403 = vsub.f32 %v32, %v402
  %v404 = vand.u32 %v403, 4294901760
  %405 = vmatpush.msra.mxu0 %v404
  %v406 = vand.u32 %v31, 4294901760
  %v407 = vsub.f32 %v31, %v406
  %v408 = vand.u32 %v407, 4294901760
  %409 = vmatpush.msra.mxu0 %v408
  %v410 = vand.u32 %v30, 4294901760
  %v411 = vsub.f32 %v30, %v410
  %v412 = vand.u32 %v411, 4294901760
  %413 = vmatpush.msra.mxu0 %v412
  %v414 = vand.u32 %v26, 4294901760
  %415 = vmatmul.f32.gmra.mxu0 %v414
  %v416 = vpop.f32.mrf.mxu0
  %v417 = vadd.f32 %v330, %v416
  %v418 = vand.u32 %v27, 4294901760
  %419 = vmatmul.f32.gmra.mxu0 %v418
  %v420 = vpop.f32.mrf.mxu0
  %v421 = vadd.f32 %v336, %v420
  %v422 = vand.u32 %v28, 4294901760
  %423 = vmatmul.f32.gmra.mxu0 %v422
  %v424 = vpop.f32.mrf.mxu0
  %v425 = vadd.f32 %v342, %v424
  %v426 = vand.u32 %v29, 4294901760
  %427 = vmatmul.f32.gmra.mxu0 %v426
  %v428 = vpop.f32.mrf.mxu0
  %v429 = vadd.f32 %v348, %v428
  %430 = vdwg.mxu0
  %v431 = vand.u32 %v45, 4294901760
  %432 = vmatpush.msra.mxu0 %v431
  %v433 = vand.u32 %v44, 4294901760
  %434 = vmatpush.msra.mxu0 %v433
  %v435 = vand.u32 %v43, 4294901760
  %436 = vmatpush.msra.mxu0 %v435
  %v437 = vand.u32 %v42, 4294901760
  %438 = vmatpush.msra.mxu0 %v437
  %v439 = vand.u32 %v41, 4294901760
  %440 = vmatpush.msra.mxu0 %v439
  %v441 = vand.u32 %v40, 4294901760
  %442 = vmatpush.msra.mxu0 %v441
  %v443 = vand.u32 %v39, 4294901760
  %444 = vmatpush.msra.mxu0 %v443
  %v445 = vand.u32 %v38, 4294901760
  %446 = vmatpush.msra.mxu0 %v445
  %v447 = vand.u32 %v37, 4294901760
  %448 = vmatpush.msra.mxu0 %v447
  %v449 = vand.u32 %v36, 4294901760
  %450 = vmatpush.msra.mxu0 %v449
  %v451 = vand.u32 %v35, 4294901760
  %452 = vmatpush.msra.mxu0 %v451
  %v453 = vand.u32 %v34, 4294901760
  %454 = vmatpush.msra.mxu0 %v453
  %v455 = vand.u32 %v33, 4294901760
  %456 = vmatpush.msra.mxu0 %v455
  %v457 = vand.u32 %v32, 4294901760
  %458 = vmatpush.msra.mxu0 %v457
  %v459 = vand.u32 %v31, 4294901760
  %460 = vmatpush.msra.mxu0 %v459
  %v461 = vand.u32 %v30, 4294901760
  %462 = vmatpush.msra.mxu0 %v461
  %v463 = vand.u32 %v26, 4294901760
  %464 = vmatmul.f32.gmra.mxu0 %v463
  %v465 = vpop.f32.mrf.mxu0
  %v466 = vadd.f32 %v417, %v465
  %v467 = vand.u32 %v27, 4294901760
  %468 = vmatmul.f32.gmra.mxu0 %v467
  %v469 = vpop.f32.mrf.mxu0
  %v470 = vadd.f32 %v421, %v469
  %v471 = vand.u32 %v28, 4294901760
  %472 = vmatmul.f32.gmra.mxu0 %v471
  %v473 = vpop.f32.mrf.mxu0
  %v474 = vadd.f32 %v425, %v473
  %v475 = vand.u32 %v29, 4294901760
  %476 = vmatmul.f32.gmra.mxu0 %v475
  %v477 = vpop.f32.mrf.mxu0
  %v478 = vadd.f32 %v429, %v477
  %479 = vdwg.mxu0
  %v480 = vld [vmem:[%s3] sm:$0xff]
  %v481 = vld [vmem:[%s3 + $0x8] sm:$0xff]
  %v482 = vld [vmem:[%s3 + $0x10] sm:$0xff]
  %v483 = vld [vmem:[%s3 + $0x18] sm:$0xff]
  %v484 = vld [vmem:[%s3 + $0x20] sm:$0xff]
  %v485 = vld [vmem:[%s3 + $0x28] sm:$0xff]
  %v486 = vld [vmem:[%s3 + $0x30] sm:$0xff]
  %v487 = vld [vmem:[%s3 + $0x38] sm:$0xff]
  %v488 = vld [vmem:[%s3 + $0x40] sm:$0xff]
  %v489 = vld [vmem:[%s3 + $0x48] sm:$0xff]
  %v490 = vld [vmem:[%s3 + $0x50] sm:$0xff]
  %v491 = vld [vmem:[%s3 + $0x58] sm:$0xff]
  %v492 = vld [vmem:[%s3 + $0x60] sm:$0xff]
  %v493 = vld [vmem:[%s3 + $0x68] sm:$0xff]
  %v494 = vld [vmem:[%s3 + $0x70] sm:$0xff]
  %v495 = vld [vmem:[%s3 + $0x78] sm:$0xff]
  %v496 = vand.u32 %v495, 4294901760
  %497 = vmatpush.msra.mxu0 %v496
  %v498 = vand.u32 %v494, 4294901760
  %499 = vmatpush.msra.mxu0 %v498
  %v500 = vand.u32 %v493, 4294901760
  %501 = vmatpush.msra.mxu0 %v500
  %v502 = vand.u32 %v492, 4294901760
  %503 = vmatpush.msra.mxu0 %v502
  %v504 = vand.u32 %v491, 4294901760
  %505 = vmatpush.msra.mxu0 %v504
  %v506 = vand.u32 %v490, 4294901760
  %507 = vmatpush.msra.mxu0 %v506
  %v508 = vand.u32 %v489, 4294901760
  %509 = vmatpush.msra.mxu0 %v508
  %v510 = vand.u32 %v488, 4294901760
  %511 = vmatpush.msra.mxu0 %v510
  %v512 = vand.u32 %v487, 4294901760
  %513 = vmatpush.msra.mxu0 %v512
  %v514 = vand.u32 %v486, 4294901760
  %515 = vmatpush.msra.mxu0 %v514
  %v516 = vand.u32 %v485, 4294901760
  %517 = vmatpush.msra.mxu0 %v516
  %v518 = vand.u32 %v484, 4294901760
  %519 = vmatpush.msra.mxu0 %v518
  %v520 = vand.u32 %v483, 4294901760
  %521 = vmatpush.msra.mxu0 %v520
  %v522 = vand.u32 %v482, 4294901760
  %523 = vmatpush.msra.mxu0 %v522
  %v524 = vand.u32 %v481, 4294901760
  %525 = vmatpush.msra.mxu0 %v524
  %v526 = vand.u32 %v480, 4294901760
  %527 = vmatpush.msra.mxu0 %v526
  %v528 = vand.u32 %v26, 4294901760
  %v529 = vsub.f32 %v26, %v528
  %v530 = vand.u32 %v529, 4294901760
  %v531 = vsub.f32 %v529, %v530
  %v532 = vand.u32 %v531, 4294901760
  %533 = vmatmul.f32.gmra.mxu0 %v532
  %v534 = vpop.f32.mrf.mxu0
  %v535 = vadd.f32 0.0, %v534
  %v536 = vand.u32 %v27, 4294901760
  %v537 = vsub.f32 %v27, %v536
  %v538 = vand.u32 %v537, 4294901760
  %v539 = vsub.f32 %v537, %v538
  %v540 = vand.u32 %v539, 4294901760
  %541 = vmatmul.f32.gmra.mxu0 %v540
  %v542 = vpop.f32.mrf.mxu0
  %v543 = vadd.f32 0.0, %v542
  %v544 = vand.u32 %v28, 4294901760
  %v545 = vsub.f32 %v28, %v544
  %v546 = vand.u32 %v545, 4294901760
  %v547 = vsub.f32 %v545, %v546
  %v548 = vand.u32 %v547, 4294901760
  %549 = vmatmul.f32.gmra.mxu0 %v548
  %v550 = vpop.f32.mrf.mxu0
  %v551 = vadd.f32 0.0, %v550
  %v552 = vand.u32 %v29, 4294901760
  %v553 = vsub.f32 %v29, %v552
  %v554 = vand.u32 %v553, 4294901760
  %v555 = vsub.f32 %v553, %v554
  %v556 = vand.u32 %v555, 4294901760
  %557 = vmatmul.f32.gmra.mxu0 %v556
  %v558 = vpop.f32.mrf.mxu0
  %v559 = vadd.f32 0.0, %v558
  %560 = vdwg.mxu0
  %v561 = vand.u32 %v495, 4294901760
  %v562 = vsub.f32 %v495, %v561
  %v563 = vand.u32 %v562, 4294901760
  %v564 = vsub.f32 %v562, %v563
  %v565 = vand.u32 %v564, 4294901760
  %566 = vmatpush.msra.mxu0 %v565
  %v567 = vand.u32 %v494, 4294901760
  %v568 = vsub.f32 %v494, %v567
  %v569 = vand.u32 %v568, 4294901760
  %v570 = vsub.f32 %v568, %v569
  %v571 = vand.u32 %v570, 4294901760
  %572 = vmatpush.msra.mxu0 %v571
  %v573 = vand.u32 %v493, 4294901760
  %v574 = vsub.f32 %v493, %v573
  %v575 = vand.u32 %v574, 4294901760
  %v576 = vsub.f32 %v574, %v575
  %v577 = vand.u32 %v576, 4294901760
  %578 = vmatpush.msra.mxu0 %v577
  %v579 = vand.u32 %v492, 4294901760
  %v580 = vsub.f32 %v492, %v579
  %v581 = vand.u32 %v580, 4294901760
  %v582 = vsub.f32 %v580, %v581
  %v583 = vand.u32 %v582, 4294901760
  %584 = vmatpush.msra.mxu0 %v583
  %v585 = vand.u32 %v491, 4294901760
  %v586 = vsub.f32 %v491, %v585
  %v587 = vand.u32 %v586, 4294901760
  %v588 = vsub.f32 %v586, %v587
  %v589 = vand.u32 %v588, 4294901760
  %590 = vmatpush.msra.mxu0 %v589
  %v591 = vand.u32 %v490, 4294901760
  %v592 = vsub.f32 %v490, %v591
  %v593 = vand.u32 %v592, 4294901760
  %v594 = vsub.f32 %v592, %v593
  %v595 = vand.u32 %v594, 4294901760
  %596 = vmatpush.msra.mxu0 %v595
  %v597 = vand.u32 %v489, 4294901760
  %v598 = vsub.f32 %v489, %v597
  %v599 = vand.u32 %v598, 4294901760
  %v600 = vsub.f32 %v598, %v599
  %v601 = vand.u32 %v600, 4294901760
  %602 = vmatpush.msra.mxu0 %v601
  %v603 = vand.u32 %v488, 4294901760
  %v604 = vsub.f32 %v488, %v603
  %v605 = vand.u32 %v604, 4294901760
  %v606 = vsub.f32 %v604, %v605
  %v607 = vand.u32 %v606, 4294901760
  %608 = vmatpush.msra.mxu0 %v607
  %v609 = vand.u32 %v487, 4294901760
  %v610 = vsub.f32 %v487, %v609
  %v611 = vand.u32 %v610, 4294901760
  %v612 = vsub.f32 %v610, %v611
  %v613 = vand.u32 %v612, 4294901760
  %614 = vmatpush.msra.mxu0 %v613
  %v615 = vand.u32 %v486, 4294901760
  %v616 = vsub.f32 %v486, %v615
  %v617 = vand.u32 %v616, 4294901760
  %v618 = vsub.f32 %v616, %v617
  %v619 = vand.u32 %v618, 4294901760
  %620 = vmatpush.msra.mxu0 %v619
  %v621 = vand.u32 %v485, 4294901760
  %v622 = vsub.f32 %v485, %v621
  %v623 = vand.u32 %v622, 4294901760
  %v624 = vsub.f32 %v622, %v623
  %v625 = vand.u32 %v624, 4294901760
  %626 = vmatpush.msra.mxu0 %v625
  %v627 = vand.u32 %v484, 4294901760
  %v628 = vsub.f32 %v484, %v627
  %v629 = vand.u32 %v628, 4294901760
  %v630 = vsub.f32 %v628, %v629
  %v631 = vand.u32 %v630, 4294901760
  %632 = vmatpush.msra.mxu0 %v631
  %v633 = vand.u32 %v483, 4294901760
  %v634 = vsub.f32 %v483, %v633
  %v635 = vand.u32 %v634, 4294901760
  %v636 = vsub.f32 %v634, %v635
  %v637 = vand.u32 %v636, 4294901760
  %638 = vmatpush.msra.mxu0 %v637
  %v639 = vand.u32 %v482, 4294901760
  %v640 = vsub.f32 %v482, %v639
  %v641 = vand.u32 %v640, 4294901760
  %v642 = vsub.f32 %v640, %v641
  %v643 = vand.u32 %v642, 4294901760
  %644 = vmatpush.msra.mxu0 %v643
  %v645 = vand.u32 %v481, 4294901760
  %v646 = vsub.f32 %v481, %v645
  %v647 = vand.u32 %v646, 4294901760
  %v648 = vsub.f32 %v646, %v647
  %v649 = vand.u32 %v648, 4294901760
  %650 = vmatpush.msra.mxu0 %v649
  %v651 = vand.u32 %v480, 4294901760
  %v652 = vsub.f32 %v480, %v651
  %v653 = vand.u32 %v652, 4294901760
  %v654 = vsub.f32 %v652, %v653
  %v655 = vand.u32 %v654, 4294901760
  %656 = vmatpush.msra.mxu0 %v655
  %v657 = vand.u32 %v26, 4294901760
  %658 = vmatmul.f32.gmra.mxu0 %v657
  %v659 = vpop.f32.mrf.mxu0
  %v660 = vadd.f32 %v535, %v659
  %v661 = vand.u32 %v27, 4294901760
  %662 = vmatmul.f32.gmra.mxu0 %v661
  %v663 = vpop.f32.mrf.mxu0
  %v664 = vadd.f32 %v543, %v663
  %v665 = vand.u32 %v28, 4294901760
  %666 = vmatmul.f32.gmra.mxu0 %v665
  %v667 = vpop.f32.mrf.mxu0
  %v668 = vadd.f32 %v551, %v667
  %v669 = vand.u32 %v29, 4294901760
  %670 = vmatmul.f32.gmra.mxu0 %v669
  %v671 = vpop.f32.mrf.mxu0
  %v672 = vadd.f32 %v559, %v671
  %673 = vdwg.mxu0
  %v674 = vand.u32 %v495, 4294901760
  %v675 = vsub.f32 %v495, %v674
  %676 = vmatpush.msra.mxu0 %v675
  %v677 = vand.u32 %v494, 4294901760
  %v678 = vsub.f32 %v494, %v677
  %679 = vmatpush.msra.mxu0 %v678
  %v680 = vand.u32 %v493, 4294901760
  %v681 = vsub.f32 %v493, %v680
  %682 = vmatpush.msra.mxu0 %v681
  %v683 = vand.u32 %v492, 4294901760
  %v684 = vsub.f32 %v492, %v683
  %685 = vmatpush.msra.mxu0 %v684
  %v686 = vand.u32 %v491, 4294901760
  %v687 = vsub.f32 %v491, %v686
  %688 = vmatpush.msra.mxu0 %v687
  %v689 = vand.u32 %v490, 4294901760
  %v690 = vsub.f32 %v490, %v689
  %691 = vmatpush.msra.mxu0 %v690
  %v692 = vand.u32 %v489, 4294901760
  %v693 = vsub.f32 %v489, %v692
  %694 = vmatpush.msra.mxu0 %v693
  %v695 = vand.u32 %v488, 4294901760
  %v696 = vsub.f32 %v488, %v695
  %697 = vmatpush.msra.mxu0 %v696
  %v698 = vand.u32 %v487, 4294901760
  %v699 = vsub.f32 %v487, %v698
  %700 = vmatpush.msra.mxu0 %v699
  %v701 = vand.u32 %v486, 4294901760
  %v702 = vsub.f32 %v486, %v701
  %703 = vmatpush.msra.mxu0 %v702
  %v704 = vand.u32 %v485, 4294901760
  %v705 = vsub.f32 %v485, %v704
  %706 = vmatpush.msra.mxu0 %v705
  %v707 = vand.u32 %v484, 4294901760
  %v708 = vsub.f32 %v484, %v707
  %709 = vmatpush.msra.mxu0 %v708
  %v710 = vand.u32 %v483, 4294901760
  %v711 = vsub.f32 %v483, %v710
  %712 = vmatpush.msra.mxu0 %v711
  %v713 = vand.u32 %v482, 4294901760
  %v714 = vsub.f32 %v482, %v713
  %715 = vmatpush.msra.mxu0 %v714
  %v716 = vand.u32 %v481, 4294901760
  %v717 = vsub.f32 %v481, %v716
  %718 = vmatpush.msra.mxu0 %v717
  %v719 = vand.u32 %v480, 4294901760
  %v720 = vsub.f32 %v480, %v719
  %721 = vmatpush.msra.mxu0 %v720
  %v722 = vand.u32 %v26, 4294901760
  %v723 = vsub.f32 %v26, %v722
  %724 = vmatmul.f32.gmra.mxu0 %v723
  %v725 = vpop.f32.mrf.mxu0
  %v726 = vadd.f32 %v660, %v725
  %v727 = vand.u32 %v27, 4294901760
  %v728 = vsub.f32 %v27, %v727
  %729 = vmatmul.f32.gmra.mxu0 %v728
  %v730 = vpop.f32.mrf.mxu0
  %v731 = vadd.f32 %v664, %v730
  %v732 = vand.u32 %v28, 4294901760
  %v733 = vsub.f32 %v28, %v732
  %734 = vmatmul.f32.gmra.mxu0 %v733
  %v735 = vpop.f32.mrf.mxu0
  %v736 = vadd.f32 %v668, %v735
  %v737 = vand.u32 %v29, 4294901760
  %v738 = vsub.f32 %v29, %v737
  %739 = vmatmul.f32.gmra.mxu0 %v738
  %v740 = vpop.f32.mrf.mxu0
  %v741 = vadd.f32 %v672, %v740
  %742 = vdwg.mxu0
  %v743 = vand.u32 %v495, 4294901760
  %744 = vmatpush.msra.mxu0 %v743
  %v745 = vand.u32 %v494, 4294901760
  %746 = vmatpush.msra.mxu0 %v745
  %v747 = vand.u32 %v493, 4294901760
  %748 = vmatpush.msra.mxu0 %v747
  %v749 = vand.u32 %v492, 4294901760
  %750 = vmatpush.msra.mxu0 %v749
  %v751 = vand.u32 %v491, 4294901760
  %752 = vmatpush.msra.mxu0 %v751
  %v753 = vand.u32 %v490, 4294901760
  %754 = vmatpush.msra.mxu0 %v753
  %v755 = vand.u32 %v489, 4294901760
  %756 = vmatpush.msra.mxu0 %v755
  %v757 = vand.u32 %v488, 4294901760
  %758 = vmatpush.msra.mxu0 %v757
  %v759 = vand.u32 %v487, 4294901760
  %760 = vmatpush.msra.mxu0 %v759
  %v761 = vand.u32 %v486, 4294901760
  %762 = vmatpush.msra.mxu0 %v761
  %v763 = vand.u32 %v485, 4294901760
  %764 = vmatpush.msra.mxu0 %v763
  %v765 = vand.u32 %v484, 4294901760
  %766 = vmatpush.msra.mxu0 %v765
  %v767 = vand.u32 %v483, 4294901760
  %768 = vmatpush.msra.mxu0 %v767
  %v769 = vand.u32 %v482, 4294901760
  %770 = vmatpush.msra.mxu0 %v769
  %v771 = vand.u32 %v481, 4294901760
  %772 = vmatpush.msra.mxu0 %v771
  %v773 = vand.u32 %v480, 4294901760
  %774 = vmatpush.msra.mxu0 %v773
  %v775 = vand.u32 %v26, 4294901760
  %v776 = vsub.f32 %v26, %v775
  %v777 = vand.u32 %v776, 4294901760
  %778 = vmatmul.f32.gmra.mxu0 %v777
  %v779 = vpop.f32.mrf.mxu0
  %v780 = vadd.f32 %v726, %v779
  %v781 = vand.u32 %v27, 4294901760
  %v782 = vsub.f32 %v27, %v781
  %v783 = vand.u32 %v782, 4294901760
  %784 = vmatmul.f32.gmra.mxu0 %v783
  %v785 = vpop.f32.mrf.mxu0
  %v786 = vadd.f32 %v731, %v785
  %v787 = vand.u32 %v28, 4294901760
  %v788 = vsub.f32 %v28, %v787
  %v789 = vand.u32 %v788, 4294901760
  %790 = vmatmul.f32.gmra.mxu0 %v789
  %v791 = vpop.f32.mrf.mxu0
  %v792 = vadd.f32 %v736, %v791
  %v793 = vand.u32 %v29, 4294901760
  %v794 = vsub.f32 %v29, %v793
  %v795 = vand.u32 %v794, 4294901760
  %796 = vmatmul.f32.gmra.mxu0 %v795
  %v797 = vpop.f32.mrf.mxu0
  %v798 = vadd.f32 %v741, %v797
  %799 = vdwg.mxu0
  %v800 = vand.u32 %v495, 4294901760
  %v801 = vsub.f32 %v495, %v800
  %v802 = vand.u32 %v801, 4294901760
  %803 = vmatpush.msra.mxu0 %v802
  %v804 = vand.u32 %v494, 4294901760
  %v805 = vsub.f32 %v494, %v804
  %v806 = vand.u32 %v805, 4294901760
  %807 = vmatpush.msra.mxu0 %v806
  %v808 = vand.u32 %v493, 4294901760
  %v809 = vsub.f32 %v493, %v808
  %v810 = vand.u32 %v809, 4294901760
  %811 = vmatpush.msra.mxu0 %v810
  %v812 = vand.u32 %v492, 4294901760
  %v813 = vsub.f32 %v492, %v812
  %v814 = vand.u32 %v813, 4294901760
  %815 = vmatpush.msra.mxu0 %v814
  %v816 = vand.u32 %v491, 4294901760
  %v817 = vsub.f32 %v491, %v816
  %v818 = vand.u32 %v817, 4294901760
  %819 = vmatpush.msra.mxu0 %v818
  %v820 = vand.u32 %v490, 4294901760
  %v821 = vsub.f32 %v490, %v820
  %v822 = vand.u32 %v821, 4294901760
  %823 = vmatpush.msra.mxu0 %v822
  %v824 = vand.u32 %v489, 4294901760
  %v825 = vsub.f32 %v489, %v824
  %v826 = vand.u32 %v825, 4294901760
  %827 = vmatpush.msra.mxu0 %v826
  %v828 = vand.u32 %v488, 4294901760
  %v829 = vsub.f32 %v488, %v828
  %v830 = vand.u32 %v829, 4294901760
  %831 = vmatpush.msra.mxu0 %v830
  %v832 = vand.u32 %v487, 4294901760
  %v833 = vsub.f32 %v487, %v832
  %v834 = vand.u32 %v833, 4294901760
  %835 = vmatpush.msra.mxu0 %v834
  %v836 = vand.u32 %v486, 4294901760
  %v837 = vsub.f32 %v486, %v836
  %v838 = vand.u32 %v837, 4294901760
  %839 = vmatpush.msra.mxu0 %v838
  %v840 = vand.u32 %v485, 4294901760
  %v841 = vsub.f32 %v485, %v840
  %v842 = vand.u32 %v841, 4294901760
  %843 = vmatpush.msra.mxu0 %v842
  %v844 = vand.u32 %v484, 4294901760
  %v845 = vsub.f32 %v484, %v844
  %v846 = vand.u32 %v845, 4294901760
  %847 = vmatpush.msra.mxu0 %v846
  %v848 = vand.u32 %v483, 4294901760
  %v849 = vsub.f32 %v483, %v848
  %v850 = vand.u32 %v849, 4294901760
  %851 = vmatpush.msra.mxu0 %v850
  %v852 = vand.u32 %v482, 4294901760
  %v853 = vsub.f32 %v482, %v852
  %v854 = vand.u32 %v853, 4294901760
  %855 = vmatpush.msra.mxu0 %v854
  %v856 = vand.u32 %v481, 4294901760
  %v857 = vsub.f32 %v481, %v856
  %v858 = vand.u32 %v857, 4294901760
  %859 = vmatpush.msra.mxu0 %v858
  %v860 = vand.u32 %v480, 4294901760
  %v861 = vsub.f32 %v480, %v860
  %v862 = vand.u32 %v861, 4294901760
  %863 = vmatpush.msra.mxu0 %v862
  %v864 = vand.u32 %v26, 4294901760
  %865 = vmatmul.f32.gmra.mxu0 %v864
  %v866 = vpop.f32.mrf.mxu0
  %v867 = vadd.f32 %v780, %v866
  %v868 = vand.u32 %v27, 4294901760
  %869 = vmatmul.f32.gmra.mxu0 %v868
  %v870 = vpop.f32.mrf.mxu0
  %v871 = vadd.f32 %v786, %v870
  %v872 = vand.u32 %v28, 4294901760
  %873 = vmatmul.f32.gmra.mxu0 %v872
  %v874 = vpop.f32.mrf.mxu0
  %v875 = vadd.f32 %v792, %v874
  %v876 = vand.u32 %v29, 4294901760
  %877 = vmatmul.f32.gmra.mxu0 %v876
  %v878 = vpop.f32.mrf.mxu0
  %v879 = vadd.f32 %v798, %v878
  %880 = vdwg.mxu0
  %v881 = vand.u32 %v495, 4294901760
  %882 = vmatpush.msra.mxu0 %v881
  %v883 = vand.u32 %v494, 4294901760
  %884 = vmatpush.msra.mxu0 %v883
  %v885 = vand.u32 %v493, 4294901760
  %886 = vmatpush.msra.mxu0 %v885
  %v887 = vand.u32 %v492, 4294901760
  %888 = vmatpush.msra.mxu0 %v887
  %v889 = vand.u32 %v491, 4294901760
  %890 = vmatpush.msra.mxu0 %v889
  %v891 = vand.u32 %v490, 4294901760
  %892 = vmatpush.msra.mxu0 %v891
  %v893 = vand.u32 %v489, 4294901760
  %894 = vmatpush.msra.mxu0 %v893
  %v895 = vand.u32 %v488, 4294901760
  %896 = vmatpush.msra.mxu0 %v895
  %v897 = vand.u32 %v487, 4294901760
  %898 = vmatpush.msra.mxu0 %v897
  %v899 = vand.u32 %v486, 4294901760
  %900 = vmatpush.msra.mxu0 %v899
  %v901 = vand.u32 %v485, 4294901760
  %902 = vmatpush.msra.mxu0 %v901
  %v903 = vand.u32 %v484, 4294901760
  %904 = vmatpush.msra.mxu0 %v903
  %v905 = vand.u32 %v483, 4294901760
  %906 = vmatpush.msra.mxu0 %v905
  %v907 = vand.u32 %v482, 4294901760
  %908 = vmatpush.msra.mxu0 %v907
  %v909 = vand.u32 %v481, 4294901760
  %910 = vmatpush.msra.mxu0 %v909
  %v911 = vand.u32 %v480, 4294901760
  %912 = vmatpush.msra.mxu0 %v911
  %v913 = vand.u32 %v26, 4294901760
  %914 = vmatmul.f32.gmra.mxu0 %v913
  %v915 = vpop.f32.mrf.mxu0
  %v916 = vadd.f32 %v867, %v915
  %v917 = vand.u32 %v27, 4294901760
  %918 = vmatmul.f32.gmra.mxu0 %v917
  %v919 = vpop.f32.mrf.mxu0
  %v920 = vadd.f32 %v871, %v919
  %v921 = vand.u32 %v28, 4294901760
  %922 = vmatmul.f32.gmra.mxu0 %v921
  %v923 = vpop.f32.mrf.mxu0
  %v924 = vadd.f32 %v875, %v923
  %v925 = vand.u32 %v29, 4294901760
  %926 = vmatmul.f32.gmra.mxu0 %v925
  %v927 = vpop.f32.mrf.mxu0
  %v928 = vadd.f32 %v879, %v927
  %929 = vdwg.mxu0
  %v930 = vld [vmem:[%s4] sm:$0xff]
  %v931 = vld [vmem:[%s4 + $0x8] sm:$0xff]
  %v932 = vld [vmem:[%s4 + $0x10] sm:$0xff]
  %v933 = vld [vmem:[%s4 + $0x18] sm:$0xff]
  %vm934 = vcmask 261120
  %v936 = vsel %vm934, %v930, 0
  %v939 = vsel %vm934, %v931, 0
  %v942 = vsel %vm934, %v932, 0
  %v945 = vsel %vm934, %v933, 0
  %947 = vmatpush.msra.mxu0 0.0
  %948 = vmatpush.msra.mxu0 0.0
  %949 = vmatpush.msra.mxu0 0.0
  %950 = vmatpush.msra.mxu0 0.0
  %951 = vmatpush.msra.mxu0 0.0
  %952 = vmatpush.msra.mxu0 0.0
  %953 = vmatpush.msra.mxu0 0.0
  %954 = vmatpush.msra.mxu0 0.0
  %955 = vmatpush.msra.mxu0 0.0
  %956 = vmatpush.msra.mxu0 0.0
  %957 = vmatpush.msra.mxu0 0.0
  %958 = vmatpush.msra.mxu0 0.0
  %v959 = vand.u32 %v478, 4294901760
  %960 = vmatpush.msra.mxu0 %v959
  %v961 = vand.u32 %v474, 4294901760
  %962 = vmatpush.msra.mxu0 %v961
  %v963 = vand.u32 %v470, 4294901760
  %964 = vmatpush.msra.mxu0 %v963
  %v965 = vand.u32 %v466, 4294901760
  %966 = vmatpush.msra.mxu0 %v965
  %v967 = vand.u32 %v936, 4294901760
  %v968 = vsub.f32 %v936, %v967
  %v969 = vand.u32 %v968, 4294901760
  %v970 = vsub.f32 %v968, %v969
  %v971 = vand.u32 %v970, 4294901760
  %972 = vmatmul.f32.gmra.mxu0 %v971
  %v973 = vpop.f32.mrf.mxu0
  %v974 = vadd.f32 0.0, %v973
  %v975 = vand.u32 %v939, 4294901760
  %v976 = vsub.f32 %v939, %v975
  %v977 = vand.u32 %v976, 4294901760
  %v978 = vsub.f32 %v976, %v977
  %v979 = vand.u32 %v978, 4294901760
  %980 = vmatmul.f32.gmra.mxu0 %v979
  %v981 = vpop.f32.mrf.mxu0
  %v982 = vadd.f32 0.0, %v981
  %v983 = vand.u32 %v942, 4294901760
  %v984 = vsub.f32 %v942, %v983
  %v985 = vand.u32 %v984, 4294901760
  %v986 = vsub.f32 %v984, %v985
  %v987 = vand.u32 %v986, 4294901760
  %988 = vmatmul.f32.gmra.mxu0 %v987
  %v989 = vpop.f32.mrf.mxu0
  %v990 = vadd.f32 0.0, %v989
  %v991 = vand.u32 %v945, 4294901760
  %v992 = vsub.f32 %v945, %v991
  %v993 = vand.u32 %v992, 4294901760
  %v994 = vsub.f32 %v992, %v993
  %v995 = vand.u32 %v994, 4294901760
  %996 = vmatmul.f32.gmra.mxu0 %v995
  %v997 = vpop.f32.mrf.mxu0
  %v998 = vadd.f32 0.0, %v997
  %999 = vdwg.mxu0
  %1000 = vmatpush.msra.mxu0 0.0
  %1001 = vmatpush.msra.mxu0 0.0
  %1002 = vmatpush.msra.mxu0 0.0
  %1003 = vmatpush.msra.mxu0 0.0
  %1004 = vmatpush.msra.mxu0 0.0
  %1005 = vmatpush.msra.mxu0 0.0
  %1006 = vmatpush.msra.mxu0 0.0
  %1007 = vmatpush.msra.mxu0 0.0
  %1008 = vmatpush.msra.mxu0 0.0
  %1009 = vmatpush.msra.mxu0 0.0
  %1010 = vmatpush.msra.mxu0 0.0
  %1011 = vmatpush.msra.mxu0 0.0
  %v1012 = vand.u32 %v478, 4294901760
  %v1013 = vsub.f32 %v478, %v1012
  %v1014 = vand.u32 %v1013, 4294901760
  %v1015 = vsub.f32 %v1013, %v1014
  %v1016 = vand.u32 %v1015, 4294901760
  %1017 = vmatpush.msra.mxu0 %v1016
  %v1018 = vand.u32 %v474, 4294901760
  %v1019 = vsub.f32 %v474, %v1018
  %v1020 = vand.u32 %v1019, 4294901760
  %v1021 = vsub.f32 %v1019, %v1020
  %v1022 = vand.u32 %v1021, 4294901760
  %1023 = vmatpush.msra.mxu0 %v1022
  %v1024 = vand.u32 %v470, 4294901760
  %v1025 = vsub.f32 %v470, %v1024
  %v1026 = vand.u32 %v1025, 4294901760
  %v1027 = vsub.f32 %v1025, %v1026
  %v1028 = vand.u32 %v1027, 4294901760
  %1029 = vmatpush.msra.mxu0 %v1028
  %v1030 = vand.u32 %v466, 4294901760
  %v1031 = vsub.f32 %v466, %v1030
  %v1032 = vand.u32 %v1031, 4294901760
  %v1033 = vsub.f32 %v1031, %v1032
  %v1034 = vand.u32 %v1033, 4294901760
  %1035 = vmatpush.msra.mxu0 %v1034
  %v1036 = vand.u32 %v936, 4294901760
  %1037 = vmatmul.f32.gmra.mxu0 %v1036
  %v1038 = vpop.f32.mrf.mxu0
  %v1039 = vadd.f32 %v974, %v1038
  %v1040 = vand.u32 %v939, 4294901760
  %1041 = vmatmul.f32.gmra.mxu0 %v1040
  %v1042 = vpop.f32.mrf.mxu0
  %v1043 = vadd.f32 %v982, %v1042
  %v1044 = vand.u32 %v942, 4294901760
  %1045 = vmatmul.f32.gmra.mxu0 %v1044
  %v1046 = vpop.f32.mrf.mxu0
  %v1047 = vadd.f32 %v990, %v1046
  %v1048 = vand.u32 %v945, 4294901760
  %1049 = vmatmul.f32.gmra.mxu0 %v1048
  %v1050 = vpop.f32.mrf.mxu0
  %v1051 = vadd.f32 %v998, %v1050
  %1052 = vdwg.mxu0
  %1053 = vmatpush.msra.mxu0 0.0
  %1054 = vmatpush.msra.mxu0 0.0
  %1055 = vmatpush.msra.mxu0 0.0
  %1056 = vmatpush.msra.mxu0 0.0
  %1057 = vmatpush.msra.mxu0 0.0
  %1058 = vmatpush.msra.mxu0 0.0
  %1059 = vmatpush.msra.mxu0 0.0
  %1060 = vmatpush.msra.mxu0 0.0
  %1061 = vmatpush.msra.mxu0 0.0
  %1062 = vmatpush.msra.mxu0 0.0
  %1063 = vmatpush.msra.mxu0 0.0
  %1064 = vmatpush.msra.mxu0 0.0
  %v1065 = vand.u32 %v478, 4294901760
  %v1066 = vsub.f32 %v478, %v1065
  %1067 = vmatpush.msra.mxu0 %v1066
  %v1068 = vand.u32 %v474, 4294901760
  %v1069 = vsub.f32 %v474, %v1068
  %1070 = vmatpush.msra.mxu0 %v1069
  %v1071 = vand.u32 %v470, 4294901760
  %v1072 = vsub.f32 %v470, %v1071
  %1073 = vmatpush.msra.mxu0 %v1072
  %v1074 = vand.u32 %v466, 4294901760
  %v1075 = vsub.f32 %v466, %v1074
  %1076 = vmatpush.msra.mxu0 %v1075
  %v1077 = vand.u32 %v936, 4294901760
  %v1078 = vsub.f32 %v936, %v1077
  %1079 = vmatmul.f32.gmra.mxu0 %v1078
  %v1080 = vpop.f32.mrf.mxu0
  %v1081 = vadd.f32 %v1039, %v1080
  %v1082 = vand.u32 %v939, 4294901760
  %v1083 = vsub.f32 %v939, %v1082
  %1084 = vmatmul.f32.gmra.mxu0 %v1083
  %v1085 = vpop.f32.mrf.mxu0
  %v1086 = vadd.f32 %v1043, %v1085
  %v1087 = vand.u32 %v942, 4294901760
  %v1088 = vsub.f32 %v942, %v1087
  %1089 = vmatmul.f32.gmra.mxu0 %v1088
  %v1090 = vpop.f32.mrf.mxu0
  %v1091 = vadd.f32 %v1047, %v1090
  %v1092 = vand.u32 %v945, 4294901760
  %v1093 = vsub.f32 %v945, %v1092
  %1094 = vmatmul.f32.gmra.mxu0 %v1093
  %v1095 = vpop.f32.mrf.mxu0
  %v1096 = vadd.f32 %v1051, %v1095
  %1097 = vdwg.mxu0
  %1098 = vmatpush.msra.mxu0 0.0
  %1099 = vmatpush.msra.mxu0 0.0
  %1100 = vmatpush.msra.mxu0 0.0
  %1101 = vmatpush.msra.mxu0 0.0
  %1102 = vmatpush.msra.mxu0 0.0
  %1103 = vmatpush.msra.mxu0 0.0
  %1104 = vmatpush.msra.mxu0 0.0
  %1105 = vmatpush.msra.mxu0 0.0
  %1106 = vmatpush.msra.mxu0 0.0
  %1107 = vmatpush.msra.mxu0 0.0
  %1108 = vmatpush.msra.mxu0 0.0
  %1109 = vmatpush.msra.mxu0 0.0
  %v1110 = vand.u32 %v478, 4294901760
  %1111 = vmatpush.msra.mxu0 %v1110
  %v1112 = vand.u32 %v474, 4294901760
  %1113 = vmatpush.msra.mxu0 %v1112
  %v1114 = vand.u32 %v470, 4294901760
  %1115 = vmatpush.msra.mxu0 %v1114
  %v1116 = vand.u32 %v466, 4294901760
  %1117 = vmatpush.msra.mxu0 %v1116
  %v1118 = vand.u32 %v936, 4294901760
  %v1119 = vsub.f32 %v936, %v1118
  %v1120 = vand.u32 %v1119, 4294901760
  %1121 = vmatmul.f32.gmra.mxu0 %v1120
  %v1122 = vpop.f32.mrf.mxu0
  %v1123 = vadd.f32 %v1081, %v1122
  %v1124 = vand.u32 %v939, 4294901760
  %v1125 = vsub.f32 %v939, %v1124
  %v1126 = vand.u32 %v1125, 4294901760
  %1127 = vmatmul.f32.gmra.mxu0 %v1126
  %v1128 = vpop.f32.mrf.mxu0
  %v1129 = vadd.f32 %v1086, %v1128
  %v1130 = vand.u32 %v942, 4294901760
  %v1131 = vsub.f32 %v942, %v1130
  %v1132 = vand.u32 %v1131, 4294901760
  %1133 = vmatmul.f32.gmra.mxu0 %v1132
  %v1134 = vpop.f32.mrf.mxu0
  %v1135 = vadd.f32 %v1091, %v1134
  %v1136 = vand.u32 %v945, 4294901760
  %v1137 = vsub.f32 %v945, %v1136
  %v1138 = vand.u32 %v1137, 4294901760
  %1139 = vmatmul.f32.gmra.mxu0 %v1138
  %v1140 = vpop.f32.mrf.mxu0
  %v1141 = vadd.f32 %v1096, %v1140
  %1142 = vdwg.mxu0
  %1143 = vmatpush.msra.mxu0 0.0
  %1144 = vmatpush.msra.mxu0 0.0
  %1145 = vmatpush.msra.mxu0 0.0
  %1146 = vmatpush.msra.mxu0 0.0
  %1147 = vmatpush.msra.mxu0 0.0
  %1148 = vmatpush.msra.mxu0 0.0
  %1149 = vmatpush.msra.mxu0 0.0
  %1150 = vmatpush.msra.mxu0 0.0
  %1151 = vmatpush.msra.mxu0 0.0
  %1152 = vmatpush.msra.mxu0 0.0
  %1153 = vmatpush.msra.mxu0 0.0
  %1154 = vmatpush.msra.mxu0 0.0
  %v1155 = vand.u32 %v478, 4294901760
  %v1156 = vsub.f32 %v478, %v1155
  %v1157 = vand.u32 %v1156, 4294901760
  %1158 = vmatpush.msra.mxu0 %v1157
  %v1159 = vand.u32 %v474, 4294901760
  %v1160 = vsub.f32 %v474, %v1159
  %v1161 = vand.u32 %v1160, 4294901760
  %1162 = vmatpush.msra.mxu0 %v1161
  %v1163 = vand.u32 %v470, 4294901760
  %v1164 = vsub.f32 %v470, %v1163
  %v1165 = vand.u32 %v1164, 4294901760
  %1166 = vmatpush.msra.mxu0 %v1165
  %v1167 = vand.u32 %v466, 4294901760
  %v1168 = vsub.f32 %v466, %v1167
  %v1169 = vand.u32 %v1168, 4294901760
  %1170 = vmatpush.msra.mxu0 %v1169
  %v1171 = vand.u32 %v936, 4294901760
  %1172 = vmatmul.f32.gmra.mxu0 %v1171
  %v1173 = vpop.f32.mrf.mxu0
  %v1174 = vadd.f32 %v1123, %v1173
  %v1175 = vand.u32 %v939, 4294901760
  %1176 = vmatmul.f32.gmra.mxu0 %v1175
  %v1177 = vpop.f32.mrf.mxu0
  %v1178 = vadd.f32 %v1129, %v1177
  %v1179 = vand.u32 %v942, 4294901760
  %1180 = vmatmul.f32.gmra.mxu0 %v1179
  %v1181 = vpop.f32.mrf.mxu0
  %v1182 = vadd.f32 %v1135, %v1181
  %v1183 = vand.u32 %v945, 4294901760
  %1184 = vmatmul.f32.gmra.mxu0 %v1183
  %v1185 = vpop.f32.mrf.mxu0
  %v1186 = vadd.f32 %v1141, %v1185
  %1187 = vdwg.mxu0
  %1188 = vmatpush.msra.mxu0 0.0
  %1189 = vmatpush.msra.mxu0 0.0
  %1190 = vmatpush.msra.mxu0 0.0
  %1191 = vmatpush.msra.mxu0 0.0
  %1192 = vmatpush.msra.mxu0 0.0
  %1193 = vmatpush.msra.mxu0 0.0
  %1194 = vmatpush.msra.mxu0 0.0
  %1195 = vmatpush.msra.mxu0 0.0
  %1196 = vmatpush.msra.mxu0 0.0
  %1197 = vmatpush.msra.mxu0 0.0
  %1198 = vmatpush.msra.mxu0 0.0
  %1199 = vmatpush.msra.mxu0 0.0
  %v1200 = vand.u32 %v478, 4294901760
  %1201 = vmatpush.msra.mxu0 %v1200
  %v1202 = vand.u32 %v474, 4294901760
  %1203 = vmatpush.msra.mxu0 %v1202
  %v1204 = vand.u32 %v470, 4294901760
  %1205 = vmatpush.msra.mxu0 %v1204
  %v1206 = vand.u32 %v466, 4294901760
  %1207 = vmatpush.msra.mxu0 %v1206
  %v1208 = vand.u32 %v936, 4294901760
  %1209 = vmatmul.f32.gmra.mxu0 %v1208
  %v1210 = vpop.f32.mrf.mxu0
  %v1211 = vadd.f32 %v1174, %v1210
  %v1212 = vand.u32 %v939, 4294901760
  %1213 = vmatmul.f32.gmra.mxu0 %v1212
  %v1214 = vpop.f32.mrf.mxu0
  %v1215 = vadd.f32 %v1178, %v1214
  %v1216 = vand.u32 %v942, 4294901760
  %1217 = vmatmul.f32.gmra.mxu0 %v1216
  %v1218 = vpop.f32.mrf.mxu0
  %v1219 = vadd.f32 %v1182, %v1218
  %v1220 = vand.u32 %v945, 4294901760
  %1221 = vmatmul.f32.gmra.mxu0 %v1220
  %v1222 = vpop.f32.mrf.mxu0
  %v1223 = vadd.f32 %v1186, %v1222
  %1224 = vdwg.mxu0
  %v1225 = vld [vmem:[%s5] sm:$0xff]
  %v1226 = vld [vmem:[%s5 + $0x8] sm:$0xff]
  %v1227 = vld [vmem:[%s5 + $0x10] sm:$0xff]
  %v1228 = vld [vmem:[%s5 + $0x18] sm:$0xff]
  %v1230 = vsel %vm934, %v1225, 0
  %v1233 = vsel %vm934, %v1226, 0
  %v1236 = vsel %vm934, %v1227, 0
  %v1239 = vsel %vm934, %v1228, 0
  %1241 = vmatpush.msra.mxu0 0.0
  %1242 = vmatpush.msra.mxu0 0.0
  %1243 = vmatpush.msra.mxu0 0.0
  %1244 = vmatpush.msra.mxu0 0.0
  %1245 = vmatpush.msra.mxu0 0.0
  %1246 = vmatpush.msra.mxu0 0.0
  %1247 = vmatpush.msra.mxu0 0.0
  %1248 = vmatpush.msra.mxu0 0.0
  %1249 = vmatpush.msra.mxu0 0.0
  %1250 = vmatpush.msra.mxu0 0.0
  %1251 = vmatpush.msra.mxu0 0.0
  %1252 = vmatpush.msra.mxu0 0.0
  %v1253 = vand.u32 %v928, 4294901760
  %1254 = vmatpush.msra.mxu0 %v1253
  %v1255 = vand.u32 %v924, 4294901760
  %1256 = vmatpush.msra.mxu0 %v1255
  %v1257 = vand.u32 %v920, 4294901760
  %1258 = vmatpush.msra.mxu0 %v1257
  %v1259 = vand.u32 %v916, 4294901760
  %1260 = vmatpush.msra.mxu0 %v1259
  %v1261 = vand.u32 %v1230, 4294901760
  %v1262 = vsub.f32 %v1230, %v1261
  %v1263 = vand.u32 %v1262, 4294901760
  %v1264 = vsub.f32 %v1262, %v1263
  %v1265 = vand.u32 %v1264, 4294901760
  %1266 = vmatmul.f32.gmra.mxu0 %v1265
  %v1267 = vpop.f32.mrf.mxu0
  %v1268 = vadd.f32 0.0, %v1267
  %v1269 = vand.u32 %v1233, 4294901760
  %v1270 = vsub.f32 %v1233, %v1269
  %v1271 = vand.u32 %v1270, 4294901760
  %v1272 = vsub.f32 %v1270, %v1271
  %v1273 = vand.u32 %v1272, 4294901760
  %1274 = vmatmul.f32.gmra.mxu0 %v1273
  %v1275 = vpop.f32.mrf.mxu0
  %v1276 = vadd.f32 0.0, %v1275
  %v1277 = vand.u32 %v1236, 4294901760
  %v1278 = vsub.f32 %v1236, %v1277
  %v1279 = vand.u32 %v1278, 4294901760
  %v1280 = vsub.f32 %v1278, %v1279
  %v1281 = vand.u32 %v1280, 4294901760
  %1282 = vmatmul.f32.gmra.mxu0 %v1281
  %v1283 = vpop.f32.mrf.mxu0
  %v1284 = vadd.f32 0.0, %v1283
  %v1285 = vand.u32 %v1239, 4294901760
  %v1286 = vsub.f32 %v1239, %v1285
  %v1287 = vand.u32 %v1286, 4294901760
  %v1288 = vsub.f32 %v1286, %v1287
  %v1289 = vand.u32 %v1288, 4294901760
  %1290 = vmatmul.f32.gmra.mxu0 %v1289
  %v1291 = vpop.f32.mrf.mxu0
  %v1292 = vadd.f32 0.0, %v1291
  %1293 = vdwg.mxu0
  %1294 = vmatpush.msra.mxu0 0.0
  %1295 = vmatpush.msra.mxu0 0.0
  %1296 = vmatpush.msra.mxu0 0.0
  %1297 = vmatpush.msra.mxu0 0.0
  %1298 = vmatpush.msra.mxu0 0.0
  %1299 = vmatpush.msra.mxu0 0.0
  %1300 = vmatpush.msra.mxu0 0.0
  %1301 = vmatpush.msra.mxu0 0.0
  %1302 = vmatpush.msra.mxu0 0.0
  %1303 = vmatpush.msra.mxu0 0.0
  %1304 = vmatpush.msra.mxu0 0.0
  %1305 = vmatpush.msra.mxu0 0.0
  %v1306 = vand.u32 %v928, 4294901760
  %v1307 = vsub.f32 %v928, %v1306
  %v1308 = vand.u32 %v1307, 4294901760
  %v1309 = vsub.f32 %v1307, %v1308
  %v1310 = vand.u32 %v1309, 4294901760
  %1311 = vmatpush.msra.mxu0 %v1310
  %v1312 = vand.u32 %v924, 4294901760
  %v1313 = vsub.f32 %v924, %v1312
  %v1314 = vand.u32 %v1313, 4294901760
  %v1315 = vsub.f32 %v1313, %v1314
  %v1316 = vand.u32 %v1315, 4294901760
  %1317 = vmatpush.msra.mxu0 %v1316
  %v1318 = vand.u32 %v920, 4294901760
  %v1319 = vsub.f32 %v920, %v1318
  %v1320 = vand.u32 %v1319, 4294901760
  %v1321 = vsub.f32 %v1319, %v1320
  %v1322 = vand.u32 %v1321, 4294901760
  %1323 = vmatpush.msra.mxu0 %v1322
  %v1324 = vand.u32 %v916, 4294901760
  %v1325 = vsub.f32 %v916, %v1324
  %v1326 = vand.u32 %v1325, 4294901760
  %v1327 = vsub.f32 %v1325, %v1326
  %v1328 = vand.u32 %v1327, 4294901760
  %1329 = vmatpush.msra.mxu0 %v1328
  %v1330 = vand.u32 %v1230, 4294901760
  %1331 = vmatmul.f32.gmra.mxu0 %v1330
  %v1332 = vpop.f32.mrf.mxu0
  %v1333 = vadd.f32 %v1268, %v1332
  %v1334 = vand.u32 %v1233, 4294901760
  %1335 = vmatmul.f32.gmra.mxu0 %v1334
  %v1336 = vpop.f32.mrf.mxu0
  %v1337 = vadd.f32 %v1276, %v1336
  %v1338 = vand.u32 %v1236, 4294901760
  %1339 = vmatmul.f32.gmra.mxu0 %v1338
  %v1340 = vpop.f32.mrf.mxu0
  %v1341 = vadd.f32 %v1284, %v1340
  %v1342 = vand.u32 %v1239, 4294901760
  %1343 = vmatmul.f32.gmra.mxu0 %v1342
  %v1344 = vpop.f32.mrf.mxu0
  %v1345 = vadd.f32 %v1292, %v1344
  %1346 = vdwg.mxu0
  %1347 = vmatpush.msra.mxu0 0.0
  %1348 = vmatpush.msra.mxu0 0.0
  %1349 = vmatpush.msra.mxu0 0.0
  %1350 = vmatpush.msra.mxu0 0.0
  %1351 = vmatpush.msra.mxu0 0.0
  %1352 = vmatpush.msra.mxu0 0.0
  %1353 = vmatpush.msra.mxu0 0.0
  %1354 = vmatpush.msra.mxu0 0.0
  %1355 = vmatpush.msra.mxu0 0.0
  %1356 = vmatpush.msra.mxu0 0.0
  %1357 = vmatpush.msra.mxu0 0.0
  %1358 = vmatpush.msra.mxu0 0.0
  %v1359 = vand.u32 %v928, 4294901760
  %v1360 = vsub.f32 %v928, %v1359
  %1361 = vmatpush.msra.mxu0 %v1360
  %v1362 = vand.u32 %v924, 4294901760
  %v1363 = vsub.f32 %v924, %v1362
  %1364 = vmatpush.msra.mxu0 %v1363
  %v1365 = vand.u32 %v920, 4294901760
  %v1366 = vsub.f32 %v920, %v1365
  %1367 = vmatpush.msra.mxu0 %v1366
  %v1368 = vand.u32 %v916, 4294901760
  %v1369 = vsub.f32 %v916, %v1368
  %1370 = vmatpush.msra.mxu0 %v1369
  %v1371 = vand.u32 %v1230, 4294901760
  %v1372 = vsub.f32 %v1230, %v1371
  %1373 = vmatmul.f32.gmra.mxu0 %v1372
  %v1374 = vpop.f32.mrf.mxu0
  %v1375 = vadd.f32 %v1333, %v1374
  %v1376 = vand.u32 %v1233, 4294901760
  %v1377 = vsub.f32 %v1233, %v1376
  %1378 = vmatmul.f32.gmra.mxu0 %v1377
  %v1379 = vpop.f32.mrf.mxu0
  %v1380 = vadd.f32 %v1337, %v1379
  %v1381 = vand.u32 %v1236, 4294901760
  %v1382 = vsub.f32 %v1236, %v1381
  %1383 = vmatmul.f32.gmra.mxu0 %v1382
  %v1384 = vpop.f32.mrf.mxu0
  %v1385 = vadd.f32 %v1341, %v1384
  %v1386 = vand.u32 %v1239, 4294901760
  %v1387 = vsub.f32 %v1239, %v1386
  %1388 = vmatmul.f32.gmra.mxu0 %v1387
  %v1389 = vpop.f32.mrf.mxu0
  %v1390 = vadd.f32 %v1345, %v1389
  %1391 = vdwg.mxu0
  %1392 = vmatpush.msra.mxu0 0.0
  %1393 = vmatpush.msra.mxu0 0.0
  %1394 = vmatpush.msra.mxu0 0.0
  %1395 = vmatpush.msra.mxu0 0.0
  %1396 = vmatpush.msra.mxu0 0.0
  %1397 = vmatpush.msra.mxu0 0.0
  %1398 = vmatpush.msra.mxu0 0.0
  %1399 = vmatpush.msra.mxu0 0.0
  %1400 = vmatpush.msra.mxu0 0.0
  %1401 = vmatpush.msra.mxu0 0.0
  %1402 = vmatpush.msra.mxu0 0.0
  %1403 = vmatpush.msra.mxu0 0.0
  %v1404 = vand.u32 %v928, 4294901760
  %1405 = vmatpush.msra.mxu0 %v1404
  %v1406 = vand.u32 %v924, 4294901760
  %1407 = vmatpush.msra.mxu0 %v1406
  %v1408 = vand.u32 %v920, 4294901760
  %1409 = vmatpush.msra.mxu0 %v1408
  %v1410 = vand.u32 %v916, 4294901760
  %1411 = vmatpush.msra.mxu0 %v1410
  %v1412 = vand.u32 %v1230, 4294901760
  %v1413 = vsub.f32 %v1230, %v1412
  %v1414 = vand.u32 %v1413, 4294901760
  %1415 = vmatmul.f32.gmra.mxu0 %v1414
  %v1416 = vpop.f32.mrf.mxu0
  %v1417 = vadd.f32 %v1375, %v1416
  %v1418 = vand.u32 %v1233, 4294901760
  %v1419 = vsub.f32 %v1233, %v1418
  %v1420 = vand.u32 %v1419, 4294901760
  %1421 = vmatmul.f32.gmra.mxu0 %v1420
  %v1422 = vpop.f32.mrf.mxu0
  %v1423 = vadd.f32 %v1380, %v1422
  %v1424 = vand.u32 %v1236, 4294901760
  %v1425 = vsub.f32 %v1236, %v1424
  %v1426 = vand.u32 %v1425, 4294901760
  %1427 = vmatmul.f32.gmra.mxu0 %v1426
  %v1428 = vpop.f32.mrf.mxu0
  %v1429 = vadd.f32 %v1385, %v1428
  %v1430 = vand.u32 %v1239, 4294901760
  %v1431 = vsub.f32 %v1239, %v1430
  %v1432 = vand.u32 %v1431, 4294901760
  %1433 = vmatmul.f32.gmra.mxu0 %v1432
  %v1434 = vpop.f32.mrf.mxu0
  %v1435 = vadd.f32 %v1390, %v1434
  %1436 = vdwg.mxu0
  %1437 = vmatpush.msra.mxu0 0.0
  %1438 = vmatpush.msra.mxu0 0.0
  %1439 = vmatpush.msra.mxu0 0.0
  %1440 = vmatpush.msra.mxu0 0.0
  %1441 = vmatpush.msra.mxu0 0.0
  %1442 = vmatpush.msra.mxu0 0.0
  %1443 = vmatpush.msra.mxu0 0.0
  %1444 = vmatpush.msra.mxu0 0.0
  %1445 = vmatpush.msra.mxu0 0.0
  %1446 = vmatpush.msra.mxu0 0.0
  %1447 = vmatpush.msra.mxu0 0.0
  %1448 = vmatpush.msra.mxu0 0.0
  %v1449 = vand.u32 %v928, 4294901760
  %v1450 = vsub.f32 %v928, %v1449
  %v1451 = vand.u32 %v1450, 4294901760
  %1452 = vmatpush.msra.mxu0 %v1451
  %v1453 = vand.u32 %v924, 4294901760
  %v1454 = vsub.f32 %v924, %v1453
  %v1455 = vand.u32 %v1454, 4294901760
  %1456 = vmatpush.msra.mxu0 %v1455
  %v1457 = vand.u32 %v920, 4294901760
  %v1458 = vsub.f32 %v920, %v1457
  %v1459 = vand.u32 %v1458, 4294901760
  %1460 = vmatpush.msra.mxu0 %v1459
  %v1461 = vand.u32 %v916, 4294901760
  %v1462 = vsub.f32 %v916, %v1461
  %v1463 = vand.u32 %v1462, 4294901760
  %1464 = vmatpush.msra.mxu0 %v1463
  %v1465 = vand.u32 %v1230, 4294901760
  %1466 = vmatmul.f32.gmra.mxu0 %v1465
  %v1467 = vpop.f32.mrf.mxu0
  %v1468 = vadd.f32 %v1417, %v1467
  %v1469 = vand.u32 %v1233, 4294901760
  %1470 = vmatmul.f32.gmra.mxu0 %v1469
  %v1471 = vpop.f32.mrf.mxu0
  %v1472 = vadd.f32 %v1423, %v1471
  %v1473 = vand.u32 %v1236, 4294901760
  %1474 = vmatmul.f32.gmra.mxu0 %v1473
  %v1475 = vpop.f32.mrf.mxu0
  %v1476 = vadd.f32 %v1429, %v1475
  %v1477 = vand.u32 %v1239, 4294901760
  %1478 = vmatmul.f32.gmra.mxu0 %v1477
  %v1479 = vpop.f32.mrf.mxu0
  %v1480 = vadd.f32 %v1435, %v1479
  %1481 = vdwg.mxu0
  %1482 = vmatpush.msra.mxu0 0.0
  %1483 = vmatpush.msra.mxu0 0.0
  %1484 = vmatpush.msra.mxu0 0.0
  %1485 = vmatpush.msra.mxu0 0.0
  %1486 = vmatpush.msra.mxu0 0.0
  %1487 = vmatpush.msra.mxu0 0.0
  %1488 = vmatpush.msra.mxu0 0.0
  %1489 = vmatpush.msra.mxu0 0.0
  %1490 = vmatpush.msra.mxu0 0.0
  %1491 = vmatpush.msra.mxu0 0.0
  %1492 = vmatpush.msra.mxu0 0.0
  %1493 = vmatpush.msra.mxu0 0.0
  %v1494 = vand.u32 %v928, 4294901760
  %1495 = vmatpush.msra.mxu0 %v1494
  %v1496 = vand.u32 %v924, 4294901760
  %1497 = vmatpush.msra.mxu0 %v1496
  %v1498 = vand.u32 %v920, 4294901760
  %1499 = vmatpush.msra.mxu0 %v1498
  %v1500 = vand.u32 %v916, 4294901760
  %1501 = vmatpush.msra.mxu0 %v1500
  %v1502 = vand.u32 %v1230, 4294901760
  %1503 = vmatmul.f32.gmra.mxu0 %v1502
  %v1504 = vpop.f32.mrf.mxu0
  %v1505 = vadd.f32 %v1468, %v1504
  %v1506 = vand.u32 %v1233, 4294901760
  %1507 = vmatmul.f32.gmra.mxu0 %v1506
  %v1508 = vpop.f32.mrf.mxu0
  %v1509 = vadd.f32 %v1472, %v1508
  %v1510 = vand.u32 %v1236, 4294901760
  %1511 = vmatmul.f32.gmra.mxu0 %v1510
  %v1512 = vpop.f32.mrf.mxu0
  %v1513 = vadd.f32 %v1476, %v1512
  %v1514 = vand.u32 %v1239, 4294901760
  %1515 = vmatmul.f32.gmra.mxu0 %v1514
  %v1516 = vpop.f32.mrf.mxu0
  %v1517 = vadd.f32 %v1480, %v1516
  %1518 = vdwg.mxu0
  %v1519 = vld [vmem:[%s6] sm:$0xff]
  %v1520 = vld [vmem:[%s6 + $0x8] sm:$0xff]
  %v1521 = vld [vmem:[%s6 + $0x10] sm:$0xff]
  %v1522 = vld [vmem:[%s6 + $0x18] sm:$0xff]
  %v1523 = vadd.f32 %v466, %v916
  %v1524 = vadd.f32 %v470, %v920
  %v1525 = vadd.f32 %v474, %v924
  %v1526 = vadd.f32 %v478, %v928
  %v1528 = vsel %vm934, %v1519, 0
  %v1531 = vsel %vm934, %v1520, 0
  %v1534 = vsel %vm934, %v1521, 0
  %v1537 = vsel %vm934, %v1522, 0
  %1539 = vmatpush.msra.mxu0 0.0
  %1540 = vmatpush.msra.mxu0 0.0
  %1541 = vmatpush.msra.mxu0 0.0
  %1542 = vmatpush.msra.mxu0 0.0
  %1543 = vmatpush.msra.mxu0 0.0
  %1544 = vmatpush.msra.mxu0 0.0
  %1545 = vmatpush.msra.mxu0 0.0
  %1546 = vmatpush.msra.mxu0 0.0
  %1547 = vmatpush.msra.mxu0 0.0
  %1548 = vmatpush.msra.mxu0 0.0
  %1549 = vmatpush.msra.mxu0 0.0
  %1550 = vmatpush.msra.mxu0 0.0
  %v1551 = vand.u32 %v1526, 4294901760
  %1552 = vmatpush.msra.mxu0 %v1551
  %v1553 = vand.u32 %v1525, 4294901760
  %1554 = vmatpush.msra.mxu0 %v1553
  %v1555 = vand.u32 %v1524, 4294901760
  %1556 = vmatpush.msra.mxu0 %v1555
  %v1557 = vand.u32 %v1523, 4294901760
  %1558 = vmatpush.msra.mxu0 %v1557
  %v1559 = vand.u32 %v1528, 4294901760
  %v1560 = vsub.f32 %v1528, %v1559
  %v1561 = vand.u32 %v1560, 4294901760
  %v1562 = vsub.f32 %v1560, %v1561
  %v1563 = vand.u32 %v1562, 4294901760
  %1564 = vmatmul.f32.gmra.mxu0 %v1563
  %v1565 = vpop.f32.mrf.mxu0
  %v1566 = vadd.f32 0.0, %v1565
  %v1567 = vand.u32 %v1531, 4294901760
  %v1568 = vsub.f32 %v1531, %v1567
  %v1569 = vand.u32 %v1568, 4294901760
  %v1570 = vsub.f32 %v1568, %v1569
  %v1571 = vand.u32 %v1570, 4294901760
  %1572 = vmatmul.f32.gmra.mxu0 %v1571
  %v1573 = vpop.f32.mrf.mxu0
  %v1574 = vadd.f32 0.0, %v1573
  %v1575 = vand.u32 %v1534, 4294901760
  %v1576 = vsub.f32 %v1534, %v1575
  %v1577 = vand.u32 %v1576, 4294901760
  %v1578 = vsub.f32 %v1576, %v1577
  %v1579 = vand.u32 %v1578, 4294901760
  %1580 = vmatmul.f32.gmra.mxu0 %v1579
  %v1581 = vpop.f32.mrf.mxu0
  %v1582 = vadd.f32 0.0, %v1581
  %v1583 = vand.u32 %v1537, 4294901760
  %v1584 = vsub.f32 %v1537, %v1583
  %v1585 = vand.u32 %v1584, 4294901760
  %v1586 = vsub.f32 %v1584, %v1585
  %v1587 = vand.u32 %v1586, 4294901760
  %1588 = vmatmul.f32.gmra.mxu0 %v1587
  %v1589 = vpop.f32.mrf.mxu0
  %v1590 = vadd.f32 0.0, %v1589
  %1591 = vdwg.mxu0
  %1592 = vmatpush.msra.mxu0 0.0
  %1593 = vmatpush.msra.mxu0 0.0
  %1594 = vmatpush.msra.mxu0 0.0
  %1595 = vmatpush.msra.mxu0 0.0
  %1596 = vmatpush.msra.mxu0 0.0
  %1597 = vmatpush.msra.mxu0 0.0
  %1598 = vmatpush.msra.mxu0 0.0
  %1599 = vmatpush.msra.mxu0 0.0
  %1600 = vmatpush.msra.mxu0 0.0
  %1601 = vmatpush.msra.mxu0 0.0
  %1602 = vmatpush.msra.mxu0 0.0
  %1603 = vmatpush.msra.mxu0 0.0
  %v1604 = vand.u32 %v1526, 4294901760
  %v1605 = vsub.f32 %v1526, %v1604
  %v1606 = vand.u32 %v1605, 4294901760
  %v1607 = vsub.f32 %v1605, %v1606
  %v1608 = vand.u32 %v1607, 4294901760
  %1609 = vmatpush.msra.mxu0 %v1608
  %v1610 = vand.u32 %v1525, 4294901760
  %v1611 = vsub.f32 %v1525, %v1610
  %v1612 = vand.u32 %v1611, 4294901760
  %v1613 = vsub.f32 %v1611, %v1612
  %v1614 = vand.u32 %v1613, 4294901760
  %1615 = vmatpush.msra.mxu0 %v1614
  %v1616 = vand.u32 %v1524, 4294901760
  %v1617 = vsub.f32 %v1524, %v1616
  %v1618 = vand.u32 %v1617, 4294901760
  %v1619 = vsub.f32 %v1617, %v1618
  %v1620 = vand.u32 %v1619, 4294901760
  %1621 = vmatpush.msra.mxu0 %v1620
  %v1622 = vand.u32 %v1523, 4294901760
  %v1623 = vsub.f32 %v1523, %v1622
  %v1624 = vand.u32 %v1623, 4294901760
  %v1625 = vsub.f32 %v1623, %v1624
  %v1626 = vand.u32 %v1625, 4294901760
  %1627 = vmatpush.msra.mxu0 %v1626
  %v1628 = vand.u32 %v1528, 4294901760
  %1629 = vmatmul.f32.gmra.mxu0 %v1628
  %v1630 = vpop.f32.mrf.mxu0
  %v1631 = vadd.f32 %v1566, %v1630
  %v1632 = vand.u32 %v1531, 4294901760
  %1633 = vmatmul.f32.gmra.mxu0 %v1632
  %v1634 = vpop.f32.mrf.mxu0
  %v1635 = vadd.f32 %v1574, %v1634
  %v1636 = vand.u32 %v1534, 4294901760
  %1637 = vmatmul.f32.gmra.mxu0 %v1636
  %v1638 = vpop.f32.mrf.mxu0
  %v1639 = vadd.f32 %v1582, %v1638
  %v1640 = vand.u32 %v1537, 4294901760
  %1641 = vmatmul.f32.gmra.mxu0 %v1640
  %v1642 = vpop.f32.mrf.mxu0
  %v1643 = vadd.f32 %v1590, %v1642
  %1644 = vdwg.mxu0
  %1645 = vmatpush.msra.mxu0 0.0
  %1646 = vmatpush.msra.mxu0 0.0
  %1647 = vmatpush.msra.mxu0 0.0
  %1648 = vmatpush.msra.mxu0 0.0
  %1649 = vmatpush.msra.mxu0 0.0
  %1650 = vmatpush.msra.mxu0 0.0
  %1651 = vmatpush.msra.mxu0 0.0
  %1652 = vmatpush.msra.mxu0 0.0
  %1653 = vmatpush.msra.mxu0 0.0
  %1654 = vmatpush.msra.mxu0 0.0
  %1655 = vmatpush.msra.mxu0 0.0
  %1656 = vmatpush.msra.mxu0 0.0
  %v1657 = vand.u32 %v1526, 4294901760
  %v1658 = vsub.f32 %v1526, %v1657
  %1659 = vmatpush.msra.mxu0 %v1658
  %v1660 = vand.u32 %v1525, 4294901760
  %v1661 = vsub.f32 %v1525, %v1660
  %1662 = vmatpush.msra.mxu0 %v1661
  %v1663 = vand.u32 %v1524, 4294901760
  %v1664 = vsub.f32 %v1524, %v1663
  %1665 = vmatpush.msra.mxu0 %v1664
  %v1666 = vand.u32 %v1523, 4294901760
  %v1667 = vsub.f32 %v1523, %v1666
  %1668 = vmatpush.msra.mxu0 %v1667
  %v1669 = vand.u32 %v1528, 4294901760
  %v1670 = vsub.f32 %v1528, %v1669
  %1671 = vmatmul.f32.gmra.mxu0 %v1670
  %v1672 = vpop.f32.mrf.mxu0
  %v1673 = vadd.f32 %v1631, %v1672
  %v1674 = vand.u32 %v1531, 4294901760
  %v1675 = vsub.f32 %v1531, %v1674
  %1676 = vmatmul.f32.gmra.mxu0 %v1675
  %v1677 = vpop.f32.mrf.mxu0
  %v1678 = vadd.f32 %v1635, %v1677
  %v1679 = vand.u32 %v1534, 4294901760
  %v1680 = vsub.f32 %v1534, %v1679
  %1681 = vmatmul.f32.gmra.mxu0 %v1680
  %v1682 = vpop.f32.mrf.mxu0
  %v1683 = vadd.f32 %v1639, %v1682
  %v1684 = vand.u32 %v1537, 4294901760
  %v1685 = vsub.f32 %v1537, %v1684
  %1686 = vmatmul.f32.gmra.mxu0 %v1685
  %v1687 = vpop.f32.mrf.mxu0
  %v1688 = vadd.f32 %v1643, %v1687
  %1689 = vdwg.mxu0
  %1690 = vmatpush.msra.mxu0 0.0
  %1691 = vmatpush.msra.mxu0 0.0
  %1692 = vmatpush.msra.mxu0 0.0
  %1693 = vmatpush.msra.mxu0 0.0
  %1694 = vmatpush.msra.mxu0 0.0
  %1695 = vmatpush.msra.mxu0 0.0
  %1696 = vmatpush.msra.mxu0 0.0
  %1697 = vmatpush.msra.mxu0 0.0
  %1698 = vmatpush.msra.mxu0 0.0
  %1699 = vmatpush.msra.mxu0 0.0
  %1700 = vmatpush.msra.mxu0 0.0
  %1701 = vmatpush.msra.mxu0 0.0
  %v1702 = vand.u32 %v1526, 4294901760
  %1703 = vmatpush.msra.mxu0 %v1702
  %v1704 = vand.u32 %v1525, 4294901760
  %1705 = vmatpush.msra.mxu0 %v1704
  %v1706 = vand.u32 %v1524, 4294901760
  %1707 = vmatpush.msra.mxu0 %v1706
  %v1708 = vand.u32 %v1523, 4294901760
  %1709 = vmatpush.msra.mxu0 %v1708
  %v1710 = vand.u32 %v1528, 4294901760
  %v1711 = vsub.f32 %v1528, %v1710
  %v1712 = vand.u32 %v1711, 4294901760
  %1713 = vmatmul.f32.gmra.mxu0 %v1712
  %v1714 = vpop.f32.mrf.mxu0
  %v1715 = vadd.f32 %v1673, %v1714
  %v1716 = vand.u32 %v1531, 4294901760
  %v1717 = vsub.f32 %v1531, %v1716
  %v1718 = vand.u32 %v1717, 4294901760
  %1719 = vmatmul.f32.gmra.mxu0 %v1718
  %v1720 = vpop.f32.mrf.mxu0
  %v1721 = vadd.f32 %v1678, %v1720
  %v1722 = vand.u32 %v1534, 4294901760
  %v1723 = vsub.f32 %v1534, %v1722
  %v1724 = vand.u32 %v1723, 4294901760
  %1725 = vmatmul.f32.gmra.mxu0 %v1724
  %v1726 = vpop.f32.mrf.mxu0
  %v1727 = vadd.f32 %v1683, %v1726
  %v1728 = vand.u32 %v1537, 4294901760
  %v1729 = vsub.f32 %v1537, %v1728
  %v1730 = vand.u32 %v1729, 4294901760
  %1731 = vmatmul.f32.gmra.mxu0 %v1730
  %v1732 = vpop.f32.mrf.mxu0
  %v1733 = vadd.f32 %v1688, %v1732
  %1734 = vdwg.mxu0
  %1735 = vmatpush.msra.mxu0 0.0
  %1736 = vmatpush.msra.mxu0 0.0
  %1737 = vmatpush.msra.mxu0 0.0
  %1738 = vmatpush.msra.mxu0 0.0
  %1739 = vmatpush.msra.mxu0 0.0
  %1740 = vmatpush.msra.mxu0 0.0
  %1741 = vmatpush.msra.mxu0 0.0
  %1742 = vmatpush.msra.mxu0 0.0
  %1743 = vmatpush.msra.mxu0 0.0
  %1744 = vmatpush.msra.mxu0 0.0
  %1745 = vmatpush.msra.mxu0 0.0
  %1746 = vmatpush.msra.mxu0 0.0
  %v1747 = vand.u32 %v1526, 4294901760
  %v1748 = vsub.f32 %v1526, %v1747
  %v1749 = vand.u32 %v1748, 4294901760
  %1750 = vmatpush.msra.mxu0 %v1749
  %v1751 = vand.u32 %v1525, 4294901760
  %v1752 = vsub.f32 %v1525, %v1751
  %v1753 = vand.u32 %v1752, 4294901760
  %1754 = vmatpush.msra.mxu0 %v1753
  %v1755 = vand.u32 %v1524, 4294901760
  %v1756 = vsub.f32 %v1524, %v1755
  %v1757 = vand.u32 %v1756, 4294901760
  %1758 = vmatpush.msra.mxu0 %v1757
  %v1759 = vand.u32 %v1523, 4294901760
  %v1760 = vsub.f32 %v1523, %v1759
  %v1761 = vand.u32 %v1760, 4294901760
  %1762 = vmatpush.msra.mxu0 %v1761
  %v1763 = vand.u32 %v1528, 4294901760
  %1764 = vmatmul.f32.gmra.mxu0 %v1763
  %v1765 = vpop.f32.mrf.mxu0
  %v1766 = vadd.f32 %v1715, %v1765
  %v1767 = vand.u32 %v1531, 4294901760
  %1768 = vmatmul.f32.gmra.mxu0 %v1767
  %v1769 = vpop.f32.mrf.mxu0
  %v1770 = vadd.f32 %v1721, %v1769
  %v1771 = vand.u32 %v1534, 4294901760
  %1772 = vmatmul.f32.gmra.mxu0 %v1771
  %v1773 = vpop.f32.mrf.mxu0
  %v1774 = vadd.f32 %v1727, %v1773
  %v1775 = vand.u32 %v1537, 4294901760
  %1776 = vmatmul.f32.gmra.mxu0 %v1775
  %v1777 = vpop.f32.mrf.mxu0
  %v1778 = vadd.f32 %v1733, %v1777
  %1779 = vdwg.mxu0
  %1780 = vmatpush.msra.mxu0 0.0
  %1781 = vmatpush.msra.mxu0 0.0
  %1782 = vmatpush.msra.mxu0 0.0
  %1783 = vmatpush.msra.mxu0 0.0
  %1784 = vmatpush.msra.mxu0 0.0
  %1785 = vmatpush.msra.mxu0 0.0
  %1786 = vmatpush.msra.mxu0 0.0
  %1787 = vmatpush.msra.mxu0 0.0
  %1788 = vmatpush.msra.mxu0 0.0
  %1789 = vmatpush.msra.mxu0 0.0
  %1790 = vmatpush.msra.mxu0 0.0
  %1791 = vmatpush.msra.mxu0 0.0
  %v1792 = vand.u32 %v1526, 4294901760
  %1793 = vmatpush.msra.mxu0 %v1792
  %v1794 = vand.u32 %v1525, 4294901760
  %1795 = vmatpush.msra.mxu0 %v1794
  %v1796 = vand.u32 %v1524, 4294901760
  %1797 = vmatpush.msra.mxu0 %v1796
  %v1798 = vand.u32 %v1523, 4294901760
  %1799 = vmatpush.msra.mxu0 %v1798
  %v1800 = vand.u32 %v1528, 4294901760
  %1801 = vmatmul.f32.gmra.mxu0 %v1800
  %v1802 = vpop.f32.mrf.mxu0
  %v1803 = vadd.f32 %v1766, %v1802
  %v1804 = vand.u32 %v1531, 4294901760
  %1805 = vmatmul.f32.gmra.mxu0 %v1804
  %v1806 = vpop.f32.mrf.mxu0
  %v1807 = vadd.f32 %v1770, %v1806
  %v1808 = vand.u32 %v1534, 4294901760
  %1809 = vmatmul.f32.gmra.mxu0 %v1808
  %v1810 = vpop.f32.mrf.mxu0
  %v1811 = vadd.f32 %v1774, %v1810
  %v1812 = vand.u32 %v1537, 4294901760
  %1813 = vmatmul.f32.gmra.mxu0 %v1812
  %v1814 = vpop.f32.mrf.mxu0
  %v1815 = vadd.f32 %v1778, %v1814
  %1816 = vdwg.mxu0
  %v1817 = vsub.f32 %v1211, %v1505
  %v1818 = vsub.f32 %v1215, %v1509
  %v1819 = vsub.f32 %v1219, %v1513
  %v1820 = vsub.f32 %v1223, %v1517
  %v1821 = vsub.f32 %v1803, %v1211
  %v1822 = vsub.f32 %v1807, %v1215
  %v1823 = vsub.f32 %v1811, %v1219
  %v1824 = vsub.f32 %v1815, %v1223
  %v1825 = vsub.f32 %v1821, %v1505
  %v1826 = vsub.f32 %v1822, %v1509
  %v1827 = vsub.f32 %v1823, %v1513
  %v1828 = vsub.f32 %v1824, %v1517
  %v1829 = vmul.f32 %v1817, %v1817
  %v1830 = vmul.f32 %v1818, %v1818
  %v1831 = vmul.f32 %v1819, %v1819
  %v1832 = vmul.f32 %v1820, %v1820
  %v1833 = vmul.f32 %v1825, %v1825
  %v1834 = vmul.f32 %v1826, %v1826
  %v1835 = vmul.f32 %v1827, %v1827
  %v1836 = vmul.f32 %v1828, %v1828
  %v1837 = vadd.f32 %v1829, %v1833
  %v1838 = vadd.f32 %v1830, %v1834
  %v1839 = vadd.f32 %v1831, %v1835
  %v1840 = vadd.f32 %v1832, %v1836
  %v1841 = vrsqrt.pop %v1837
  %v1842 = vmul.f32 %v1841, %v1837
  %v1843 = vmul.f32 %v1842, %v1841
  %v1844 = vmul.f32 0.5, %v1843
  %v1845 = vsub.f32 1.5, %v1844
  %v1846 = vmul.f32 %v1841, %v1845
  %v1847 = vmul.f32 %v1837, %v1846
  %vm1848 = vcmp.eq.f32.partialorder %v1837, inf
  %v1849 = vsel %vm1848, %v1837, %v1847
  %vm1850 = vcmp.eq.f32.partialorder %v1837, 0.0
  %v1851 = vand.u32 %v1837, 2147483648
  %v1852 = vsel %vm1850, %v1851, %v1849
  %v1853 = vrsqrt.pop %v1838
  %v1854 = vmul.f32 %v1853, %v1838
  %v1855 = vmul.f32 %v1854, %v1853
  %v1856 = vmul.f32 0.5, %v1855
  %v1857 = vsub.f32 1.5, %v1856
  %v1858 = vmul.f32 %v1853, %v1857
  %v1859 = vmul.f32 %v1838, %v1858
  %vm1860 = vcmp.eq.f32.partialorder %v1838, inf
  %v1861 = vsel %vm1860, %v1838, %v1859
  %vm1862 = vcmp.eq.f32.partialorder %v1838, 0.0
  %v1863 = vand.u32 %v1838, 2147483648
  %v1864 = vsel %vm1862, %v1863, %v1861
  %v1865 = vrsqrt.pop %v1839
  %v1866 = vmul.f32 %v1865, %v1839
  %v1867 = vmul.f32 %v1866, %v1865
  %v1868 = vmul.f32 0.5, %v1867
  %v1869 = vsub.f32 1.5, %v1868
  %v1870 = vmul.f32 %v1865, %v1869
  %v1871 = vmul.f32 %v1839, %v1870
  %vm1872 = vcmp.eq.f32.partialorder %v1839, inf
  %v1873 = vsel %vm1872, %v1839, %v1871
  %vm1874 = vcmp.eq.f32.partialorder %v1839, 0.0
  %v1875 = vand.u32 %v1839, 2147483648
  %v1876 = vsel %vm1874, %v1875, %v1873
  %v1877 = vrsqrt.pop %v1840
  %v1878 = vmul.f32 %v1877, %v1840
  %v1879 = vmul.f32 %v1878, %v1877
  %v1880 = vmul.f32 0.5, %v1879
  %v1881 = vsub.f32 1.5, %v1880
  %v1882 = vmul.f32 %v1877, %v1881
  %v1883 = vmul.f32 %v1840, %v1882
  %vm1884 = vcmp.eq.f32.partialorder %v1840, inf
  %v1885 = vsel %vm1884, %v1840, %v1883
  %vm1886 = vcmp.eq.f32.partialorder %v1840, 0.0
  %v1887 = vand.u32 %v1840, 2147483648
  %v1888 = vsel %vm1886, %v1887, %v1885
  %v1889 = vsub.f32 %v1852, %v1876
  %v1890 = vsub.f32 %v1864, %v1888
  %v1891 = vand.u32 2147483647, %v1889
  %v1892 = vand.u32 2147483647, %v1890
  %v1893 = vadd.f32 %v1891, %v1892
  %1894 = vst [vmem:[%s7] sm:$0xff] %v1893
  // Predicated region
  $region30: #{amp_loss.1} parent=0 // pred_check
    _
  $region31: #{amp_loss.1} parent=0 // pred_check_branch
    %1896 = sbr.rel (0) target = $region33
  $region32: #{amp_loss.1} parent=0 // pred_region
    _
  $region33: #{amp_loss.1} parent=0 // pred_fallthru
    _
  // Predicated region
  $region34: #{amp_loss.1} parent=0 // pred_check
    _
  $region35: #{amp_loss.1} parent=0 // pred_check_branch
    %1898 = sbr.rel (0) target = $region37
  $region36: #{amp_loss.1} parent=0 // pred_region
    _
  $region37: #{amp_loss.1} parent=0 // pred_fallthru
    _

</llo_original>
